<compile_context>
chip_gen: v7x
topology: tpu7x:2x2x1
jax: 0.10.0
libtpu: 0.0.40
codegen_flags: <defaults>
</compile_context>

<pallas_src>
import functools
import math

import jax
import jax.numpy as jnp
from jax.experimental import pallas as pl
from jax.experimental.pallas import tpu as pltpu


_SCORE_LANES = 128  # lane-dense score output width (wrapper slices to [:, :1])


def _round_up(x, m):
    return ((x + m - 1) // m) * m


def _gelu_exact(x):
    # Matches PyTorch nn.GELU() default (erf-based, approximate='none').
    return 0.5 * x * (1.0 + jax.lax.erf(x * (1.0 / math.sqrt(2.0))))


@functools.lru_cache(maxsize=None)
def _vmem_capacity_bytes():
    """Per-core VMEM capacity (64 MiB on v7x, 128 MiB on v5e/v6e); falls back
    to a conservative 64 MiB if the query is unavailable on this build."""
    try:
        return int(pltpu.get_tpu_info().vmem_capacity_bytes)
    except Exception:  # info query only; never changes kernel semantics
        return 64 << 20


@functools.lru_cache(maxsize=None)
def _buffered_one_supported():
    """Explicit capability probe: does this JAX/Mosaic build accept
    pipeline_mode=pl.Buffered(1) (single-buffered constant-index operands)?"""
    def _probe(x_ref, o_ref):
        o_ref[...] = x_ref[...]

    try:
        spec = pl.BlockSpec((8, 128), lambda i: (0, 0),
                            pipeline_mode=pl.Buffered(1))
        fn = pl.pallas_call(
            _probe,
            out_shape=jax.ShapeDtypeStruct((8, 128), jnp.float32),
            grid=(1,),
            in_specs=[spec],
            out_specs=pl.BlockSpec((8, 128), lambda i: (0, 0)))
        jax.block_until_ready(fn(jnp.zeros((8, 128), jnp.float32)))
        return True
    except Exception:  # capability probe only; main call never retried blindly
        return False


def _footprint_bytes(tn, H, E, K, wbytes, abytes, single_buffer_weights):
    """Approximate peak VMEM footprint (bytes) for one kernel instance."""
    nres = 1 if single_buffer_weights else 2
    lane_h = max(_round_up(H, 128), 128)
    # Constant-index operands: verifier weight + bias/row vectors (biases stay
    # f32 and are padded to at least one (8, 128) tile per 128 lanes).
    resident = nres * (H * H * wbytes + 4 * 8 * lane_h * 4)
    # Corrector weight slice(s): resident when K == 1, streamed
    # (double-buffered) when sliced along the 2H expansion dim.
    nk = nres if K == 1 else 2
    resident += nk * ((H * E + E * H) * wbytes
                      + 8 * max(_round_up(E, 128), 128) * 4)
    # Pipelined row tiles (double-buffered in/out) + f32 score slab.
    io = 2 * tn * H * abytes * 2 + 2 * tn * _SCORE_LANES * 4
    # Scratch accumulators (f32), incl. lane padding of the [TN, 1] score.
    scratch = tn * H * 4 + tn * _SCORE_LANES * 4
    # Live f32 temporaries: GELU product [TN, E] + its MXU-dtype copy +
    # verifier intermediate / blend temp [TN, H].
    temps = tn * E * (4 + wbytes) + 2 * tn * H * 4
    return resident + io + scratch + temps


def _select_tiling(n_rows, H, wbytes, abytes, capacity, row_tile, k_split,
                   single_buffer_weights, margin):
    """Pick (K, TN): K-way split of the corrector's 2H expansion dim and the
    row tile, preferring fully-resident weights (K = 1) and the largest row
    tile that fits the per-core VMEM budget."""
    budget = max(capacity - margin, 16 << 20)
    n8 = _round_up(max(n_rows, 1), 8)

    # Row-tile candidates: descending multiples of 8, clamped to the row count.
    cap = row_tile if row_tile is not None else 1024
    t = max(8, _round_up(min(cap, n8), 8))
    tn_cands = []
    while True:
        tn_cands.append(t)
        if t <= 8:
            break
        t = max(8, _round_up(t // 2, 8))

    # Expansion-split candidates: K=1 (resident weights), then powers of two
    # keeping the slice width E = 2H/K a multiple of 128 lanes.
    if k_split is not None:
        k_cands = [int(k_split)]
    else:
        k_cands = [1]
        k = 2
        while ((2 * H) % k == 0 and (2 * H) // k >= 128
               and ((2 * H) // k) % 128 == 0):
            k_cands.append(k)
            k *= 2

    for K in k_cands:
        E = (2 * H) // K
        for tn in tn_cands:
            if _footprint_bytes(tn, H, E, K, wbytes, abytes,
                                single_buffer_weights) <= budget:
                return K, tn
    # Nothing fits the model comfortably: most aggressive slicing + smallest
    # row tile; the compiler's own VMEM accounting has the final word.
    return k_cands[-1], tn_cands[-1]


def _kv_kernel(h_ref, w1v_ref, b1v_ref, w2v_ref, b2v_ref,
               w1c_ref, b1c_ref, w2c_ref, b2c_ref,
               out_ref, score_ref, acc_ref, score_sc):
    f32 = jnp.float32
    k = pl.program_id(1)
    nk = pl.num_programs(1)

    h = h_ref[...]                                            # [TN, H]

    # Verifier branch (H->H->1) + sigmoid score: only on the first corrector
    # slice step; the score is held in scratch for the final gated blend.
    @pl.when(k == 0)
    def _():
        v1 = jnp.dot(h.astype(w1v_ref.dtype), w1v_ref[...],
                     preferred_element_type=f32)
        v1 = _gelu_exact(v1 + b1v_ref[...].astype(f32))       # [TN, H] f32
        # Output width 1 -> VPU multiply + cross-lane reduce (free slots in an
        # MXU-bound kernel) instead of a nearly-empty MXU matmul.
        v2 = jnp.sum(v1 * w2v_ref[...].astype(f32), axis=-1, keepdims=True)
        score_sc[...] = jax.nn.sigmoid(v2 + b2v_ref[...].astype(f32))
        acc_ref[...] = jnp.zeros_like(acc_ref)

    # Corrector slice k of the 2H expansion dim:
    #   acc += GELU(h @ w1c_k + b1c_k) @ w2c_k     (f32 accumulation)
    # TODO(synk): if bundle dumps show the erf-GELU saturating the VALU for
    # small H on v6e/v7x, evaluate the polynomial in bf16 (keep f32 bias/acc).
    c1 = jnp.dot(h.astype(w1c_ref.dtype), w1c_ref[...],
                 preferred_element_type=f32)
    c1 = _gelu_exact(c1 + b1c_ref[...].astype(f32))           # [TN, E] f32
    acc_ref[...] += jnp.dot(c1.astype(w2c_ref.dtype), w2c_ref[...],
                            preferred_element_type=f32)

    # Finalize: gated blend + lane-dense f32 score store.
    @pl.when(k == nk - 1)
    def _():
        score = score_sc[...]                                 # [TN, 1] f32
        corr = acc_ref[...] + b2c_ref[...].astype(f32)
        out = h.astype(f32) * score + corr * (1.0 - score)
        out_ref[...] = out.astype(out_ref.dtype)
        # TODO(synk): optionally move the score onto the lane axis (XLU) and
        # store a [grid_i, TN] row instead of broadcasting to 128 lanes.
        score_ref[...] = jnp.broadcast_to(score, score_ref.shape).astype(
            score_ref.dtype)


def knowledge_verifier(hidden_states, original_states, params, *,
                       row_tile=None, k_split=None,
                       single_buffer_weights=True,
                       vmem_margin_bytes=6 << 20):
    """hidden_states, original_states: [B, S, H]. original_states is unused,
    mirroring the PyTorch forward. params from pack_params().
    Returns (output [B, S, H] in hidden_states.dtype, scores [B, S, 1] f32)."""
    del original_states  # not used by the reference forward pass
    B, S, H = hidden_states.shape
    (w1v, b1v, w2v, b2v, w1c, b1c, w2c, b2c) = params

    N = B * S
    x = hidden_states.reshape(N, H)
    wbytes = jnp.dtype(w1c.dtype).itemsize
    abytes = jnp.dtype(x.dtype).itemsize

    if k_split is not None:
        if k_split < 1 or (2 * H) % k_split != 0 or (
                k_split > 1 and ((2 * H) // k_split) % 128 != 0):
            raise ValueError(
                "k_split must divide 2*H and give a 128-multiple slice width")

    capacity = _vmem_capacity_bytes()
    use_single = single_buffer_weights and _buffered_one_supported()
    K, tn = _select_tiling(N, H, wbytes, abytes, capacity, row_tile, k_split,
                           use_single, vmem_margin_bytes)
    E = (2 * H) // K

    def const_spec(arr):
        idx = lambda i, k, _nd=arr.ndim: (0,) * _nd
        if use_single:
            # Block index never changes across the grid: single-buffer so the
            # VMEM footprint is not doubled for no benefit.
            return pl.BlockSpec(arr.shape, idx, pipeline_mode=pl.Buffered(1))
        return pl.BlockSpec(arr.shape, idx)

    row_spec = pl.BlockSpec((tn, H), lambda i, k: (i, 0))
    score_spec = pl.BlockSpec((tn, _SCORE_LANES), lambda i, k: (i, 0))

    if K == 1:
        w1c_spec = const_spec(w1c)
        b1c_spec = const_spec(b1c)
        w2c_spec = const_spec(w2c)
    else:
        # Stream corrector weight slices along the trailing "arbitrary" axis
        # (double-buffered so the slice DMA overlaps the matmuls).
        w1c_spec = pl.BlockSpec((H, E), lambda i, k: (0, k))
        b1c_spec = pl.BlockSpec((1, E), lambda i, k: (0, k))
        w2c_spec = pl.BlockSpec((E, H), lambda i, k: (k, 0))

    footprint = _footprint_bytes(tn, H, E, K, wbytes, abytes, use_single)
    vmem_limit = int(min(capacity, max(32 << 20, footprint + (8 << 20))))

    out2d, score2d = pl.pallas_call(
        _kv_kernel,
        out_shape=(jax.ShapeDtypeStruct((N, H), hidden_states.dtype),
                   jax.ShapeDtypeStruct((N, _SCORE_LANES), jnp.float32)),
        grid=(pl.cdiv(N, tn), K),
        in_specs=[row_spec,
                  const_spec(w1v), const_spec(b1v),
                  const_spec(w2v), const_spec(b2v),
                  w1c_spec, b1c_spec, w2c_spec,
                  const_spec(b2c)],
        out_specs=(row_spec, score_spec),
        scratch_shapes=[pltpu.VMEM((tn, H), jnp.float32),   # corrector acc
                        pltpu.VMEM((tn, 1), jnp.float32)],  # score
        compiler_params=pltpu.CompilerParams(
            dimension_semantics=("parallel", "arbitrary"),
            vmem_limit_bytes=vmem_limit),
    )(x, w1v, b1v, w2v, b2v, w1c, b1c, w2c, b2c)

    out = out2d.reshape(B, S, H)
    scores = score2d[:, :1].reshape(B, S, 1)
    return out, scores


def init_raw_params(key, hidden_size, dtype=jnp.float32):
    """PyTorch nn.Linear-style init: U(-1/sqrt(fan_in), 1/sqrt(fan_in)).
    Weights stored as [in, out] (transposed vs. torch's [out, in])."""
    H = hidden_size

    def linear(k, fan_in, fan_out):
        kw, kb = jax.random.split(k)
        bound = 1.0 / math.sqrt(fan_in)
        w = jax.random.uniform(kw, (fan_in, fan_out), dtype, -bound, bound)
        b = jax.random.uniform(kb, (1, fan_out), dtype, -bound, bound)
        return w, b

    k1, k2, k3, k4 = jax.random.split(key, 4)
    w1v, b1v = linear(k1, H, H)          # verifier.0
    w2v, b2v = linear(k2, H, 1)          # verifier.2
    w1c, b1c = linear(k3, H, 2 * H)      # corrector.0
    w2c, b2c = linear(k4, 2 * H, H)      # corrector.2
    return (w1v, b1v, w2v, b2v, w1c, b1c, w2c, b2c)


def pack_params(raw_params, weight_dtype=jnp.bfloat16):
    """Pack params into the layout the kernel expects.  weight_dtype defaults
    to bf16 (native MXU dtype on v5e/v6e/v7x and half the resident VMEM);
    pass weight_dtype=None for the f32 accuracy-debug mode.  Biases and the
    width-1 verifier head stay f32."""
    (w1v, b1v, w2v, b2v, w1c, b1c, w2c, b2c) = raw_params
    w2v_row = w2v.T                               # [1, H] VPU-reduction head
    if weight_dtype is not None:
        w1v = w1v.astype(weight_dtype)
        w1c = w1c.astype(weight_dtype)
        w2c = w2c.astype(weight_dtype)
    return (w1v, b1v, w2v_row, b2v, w1c, b1c, w2c, b2c)


def reference_forward(hidden_states, raw_params):
    """Pure-JAX reference matching the PyTorch module."""
    (w1v, b1v, w2v, b2v, w1c, b1c, w2c, b2c) = raw_params
    v = _gelu_exact(hidden_states @ w1v + b1v)
    score = jax.nn.sigmoid(v @ w2v + b2v)
    c = _gelu_exact(hidden_states @ w1c + b1c)
    corr = c @ w2c + b2c
    out = hidden_states * score + corr * (1 - score)
    return out, score


if __name__ == "__main__":
    # f32-exact reference matmuls so the tolerance checks are meaningful.
    jax.config.update("jax_default_matmul_precision", "highest")
    key = jax.random.PRNGKey(0)

    def check(B, S, H, tol, *, weight_dtype=None, row_tile=None, k_split=None):
        kp, kh, ko = jax.random.split(
            jax.random.fold_in(key, 131 * H + 7 * B + S), 3)
        raw = init_raw_params(kp, H)
        params = pack_params(raw, weight_dtype=weight_dtype)
        hidden_states = jax.random.normal(kh, (B, S, H), jnp.float32)
        original_states = jax.random.normal(ko, (B, S, H), jnp.float32)

        out, scores = knowledge_verifier(hidden_states, original_states,
                                         params, row_tile=row_tile,
                                         k_split=k_split)
        out = jax.block_until_ready(out)
        scores = jax.block_until_ready(scores)

        ref_out, ref_scores = reference_forward(hidden_states, raw)
        assert out.shape == (B, S, H) and scores.shape == (B, S, 1)
        err_o = float(jnp.max(jnp.abs(out.astype(jnp.float32) - ref_out)))
        err_s = float(jnp.max(jnp.abs(scores.astype(jnp.float32) - ref_scores)))
        assert err_o <= tol, (B, S, H, "out", err_o)
        assert err_s <= tol, (B, S, H, "scores", err_s)

    # Small shape implied by the module (batch=2, seq=8, hidden=32), f32-exact.
    check(2, 8, 32, 1e-5)
    # Multiple row tiles + parallel row grid.
    check(4, 96, 128, 1e-4, row_tile=128)
    # Corrector 2H-expansion weight slicing (v7x large-H path) combined with
    # multiple row tiles: exercises the k-accumulator init/finalize.
    check(4, 96, 128, 1e-4, row_tile=128, k_split=2)
    # Ragged row count: no wrapper-side padding, cdiv grid, masked tail tile.
    check(3, 7, 128, 1e-4, row_tile=8)
    # bf16 MXU weights (recommended production mode), looser tolerance.
    check(2, 32, 128, 1e-1, weight_dtype=jnp.bfloat16)

    print("KERNEL_OK")
</pallas_src>

<mosaic_0001>
module attributes {stable_mosaic.version = 11 : i64} {
  func.func @_probe(%arg0: i32, %arg1: memref<8x128xf32, #tpu.memory_space<vmem>>, %arg2: memref<8x128xf32, #tpu.memory_space<vmem>>) attributes {dimension_semantics = [#tpu.dimension_semantics<arbitrary>], iteration_bounds = array<i64: 1>, scalar_prefetch = 0 : i64, scratch_operands = 0 : i64, tpu.core_type = #tpu.core_type<tc>, window_params = [{pipeline_mode = #tpu.pipeline_mode<synchronous>, transform_indices = @transform_0, window_bounds = array<i64: 8, 128>}, {pipeline_mode = #tpu.pipeline_mode<synchronous>, transform_indices = @transform_1, window_bounds = array<i64: 8, 128>}]} {
    %c0 = arith.constant 0 : index
    %c0_0 = arith.constant 0 : index
    %0 = vector.load %arg1[%c0, %c0_0] : memref<8x128xf32, #tpu.memory_space<vmem>>, vector<8x128xf32>
    %c0_1 = arith.constant 0 : index
    %c0_2 = arith.constant 0 : index
    %1 = vector.load %arg2[%c0_1, %c0_2] : memref<8x128xf32, #tpu.memory_space<vmem>>, vector<8x128xf32>
    tpu.vector_store %arg2[%c0_1, %c0_2], %0 {strides = array<i32>} : memref<8x128xf32, #tpu.memory_space<vmem>>, vector<8x128xf32>,
    return
  }
  func.func @transform_0(%arg0: i32) -> (i32, i32) {
    %c0_i32 = arith.constant 0 : i32
    %c0_i32_0 = arith.constant 0 : i32
    %c0_i32_1 = arith.constant 0 : i32
    return %c0_i32, %c0_i32_0 : i32, i32
  }
  func.func @transform_1(%arg0: i32) -> (i32, i32) {
    %c0_i32 = arith.constant 0 : i32
    %c0_i32_0 = arith.constant 0 : i32
    %c0_i32_1 = arith.constant 0 : i32
    return %c0_i32, %c0_i32_0 : i32, i32
  }
}

module attributes {stable_mosaic.version = 11 : i64} {
  func.func @_kv_kernel(%arg0: i32, %arg1: i32, %arg2: memref<16x32xf32, #tpu.memory_space<vmem>>, %arg3: memref<32x32xf32, #tpu.memory_space<vmem>>, %arg4: memref<1x32xf32, #tpu.memory_space<vmem>>, %arg5: memref<1x32xf32, #tpu.memory_space<vmem>>, %arg6: memref<1x1xf32, #tpu.memory_space<vmem>>, %arg7: memref<32x64xf32, #tpu.memory_space<vmem>>, %arg8: memref<1x64xf32, #tpu.memory_space<vmem>>, %arg9: memref<64x32xf32, #tpu.memory_space<vmem>>, %arg10: memref<1x32xf32, #tpu.memory_space<vmem>>, %arg11: memref<16x32xf32, #tpu.memory_space<vmem>>, %arg12: memref<16x128xf32, #tpu.memory_space<vmem>>, %arg13: memref<16x32xf32, #tpu.memory_space<vmem>>, %arg14: memref<16x1xf32, #tpu.memory_space<vmem>>) attributes {dimension_semantics = [#tpu.dimension_semantics<parallel>, #tpu.dimension_semantics<arbitrary>], iteration_bounds = array<i64: 1, 1>, scalar_prefetch = 0 : i64, scratch_operands = 2 : i64, tpu.core_type = #tpu.core_type<tc>, window_params = [{transform_indices = @transform_0, window_bounds = array<i64: 16, 32>}, {pipeline_mode = #tpu.pipeline_mode<synchronous>, transform_indices = @transform_1, window_bounds = array<i64: 32, 32>}, {pipeline_mode = #tpu.pipeline_mode<synchronous>, transform_indices = @transform_2, window_bounds = array<i64: 1, 32>}, {pipeline_mode = #tpu.pipeline_mode<synchronous>, transform_indices = @transform_3, window_bounds = array<i64: 1, 32>}, {pipeline_mode = #tpu.pipeline_mode<synchronous>, transform_indices = @transform_4, window_bounds = array<i64: 1, 1>}, {pipeline_mode = #tpu.pipeline_mode<synchronous>, transform_indices = @transform_5, window_bounds = array<i64: 32, 64>}, {pipeline_mode = #tpu.pipeline_mode<synchronous>, transform_indices = @transform_6, window_bounds = array<i64: 1, 64>}, {pipeline_mode = #tpu.pipeline_mode<synchronous>, transform_indices = @transform_7, window_bounds = array<i64: 64, 32>}, {pipeline_mode = #tpu.pipeline_mode<synchronous>, transform_indices = @transform_8, window_bounds = array<i64: 1, 32>}, {transform_indices = @transform_9, window_bounds = array<i64: 16, 32>}, {transform_indices = @transform_10, window_bounds = array<i64: 16, 128>}]} {
    %c0 = arith.constant 0 : index
    %c0_0 = arith.constant 0 : index
    %0 = vector.load %arg2[%c0, %c0_0] : memref<16x32xf32, #tpu.memory_space<vmem>>, vector<16x32xf32>
    %c0_i32 = arith.constant 0 : i32
    %1 = arith.cmpi eq, %arg1, %c0_i32 : i32
    %2 = arith.extui %1 : i1 to i32
    %c0_i32_1 = arith.constant 0 : i32
    %3 = arith.cmpi ne, %2, %c0_i32_1 : i32
    scf.if %3 {
      %c0_18 = arith.constant 0 : index
      %c0_19 = arith.constant 0 : index
      %25 = vector.load %arg3[%c0_18, %c0_19] : memref<32x32xf32, #tpu.memory_space<vmem>>, vector<32x32xf32>
      %cst_20 = arith.constant dense<0.000000e+00> : vector<16x32xf32>
      %26 = tpu.matmul %0, %25, %cst_20 {dimension_numbers = #tpu.dot_dimension_numbers<[1], [0], [0], [1], [0, 0, 1, 1], [], []>, precision = #tpu.contract_precision<fp32>} : vector<16x32xf32>, vector<32x32xf32>, vector<16x32xf32> -> vector<16x32xf32>
      %c0_21 = arith.constant 0 : index
      %c0_22 = arith.constant 0 : index
      %27 = vector.load %arg4[%c0_21, %c0_22] : memref<1x32xf32, #tpu.memory_space<vmem>>, vector<1x32xf32>
      %28 = vector.broadcast %27 : vector<1x32xf32> to vector<16x32xf32>
      %29 = arith.addf %26, %28 : vector<16x32xf32>
      %cst_23 = arith.constant 5.000000e-01 : f32
      %30 = vector.broadcast %cst_23 : f32 to vector<16x32xf32>
      %31 = arith.mulf %30, %29 : vector<16x32xf32>
      %cst_24 = arith.constant 0.707106769 : f32
      %32 = vector.broadcast %cst_24 : f32 to vector<16x32xf32>
      %33 = arith.mulf %29, %32 : vector<16x32xf32>
      %34 = math.erf %33 : vector<16x32xf32>
      %cst_25 = arith.constant 1.000000e+00 : f32
      %35 = vector.broadcast %cst_25 : f32 to vector<16x32xf32>
      %36 = arith.addf %35, %34 : vector<16x32xf32>
      %37 = arith.mulf %31, %36 : vector<16x32xf32>
      %c0_26 = arith.constant 0 : index
      %c0_27 = arith.constant 0 : index
      %38 = vector.load %arg5[%c0_26, %c0_27] : memref<1x32xf32, #tpu.memory_space<vmem>>, vector<1x32xf32>
      %39 = vector.broadcast %38 : vector<1x32xf32> to vector<16x32xf32>
      %40 = arith.mulf %37, %39 : vector<16x32xf32>
      %cst_28 = arith.constant dense<0.000000e+00> : vector<16xf32>
      %41 = vector.multi_reduction <add>, %40, %cst_28 [1] : vector<16x32xf32> to vector<16xf32>
      %42 = vector.shape_cast %41 : vector<16xf32> to vector<16x1xf32>
      %c0_29 = arith.constant 0 : index
      %c0_30 = arith.constant 0 : index
      %43 = vector.load %arg6[%c0_29, %c0_30] : memref<1x1xf32, #tpu.memory_space<vmem>>, vector<1x1xf32>
      %44 = vector.broadcast %43 : vector<1x1xf32> to vector<16x1xf32>
      %45 = arith.addf %42, %44 : vector<16x1xf32>
      %46 = arith.negf %45 : vector<16x1xf32>
      %47 = math.exp %46 : vector<16x1xf32>
      %cst_31 = arith.constant 1.000000e+00 : f32
      %48 = vector.broadcast %cst_31 : f32 to vector<16x1xf32>
      %49 = arith.addf %48, %47 : vector<16x1xf32>
      %50 = arith.divf %48, %49 : vector<16x1xf32>
      %c0_32 = arith.constant 0 : index
      %c0_33 = arith.constant 0 : index
      %51 = vector.load %arg14[%c0_32, %c0_33] : memref<16x1xf32, #tpu.memory_space<vmem>>, vector<16x1xf32>
      tpu.vector_store %arg14[%c0_32, %c0_33], %50 {strides = array<i32>} : memref<16x1xf32, #tpu.memory_space<vmem>>, vector<16x1xf32>,
      %cst_34 = arith.constant 0.000000e+00 : f32
      %52 = vector.broadcast %cst_34 : f32 to vector<16x32xf32>
      %c0_35 = arith.constant 0 : index
      %c0_36 = arith.constant 0 : index
      %53 = vector.load %arg13[%c0_35, %c0_36] : memref<16x32xf32, #tpu.memory_space<vmem>>, vector<16x32xf32>
      tpu.vector_store %arg13[%c0_35, %c0_36], %52 {strides = array<i32>} : memref<16x32xf32, #tpu.memory_space<vmem>>, vector<16x32xf32>,
    } else {
    }
    %c0_2 = arith.constant 0 : index
    %c0_3 = arith.constant 0 : index
    %4 = vector.load %arg7[%c0_2, %c0_3] : memref<32x64xf32, #tpu.memory_space<vmem>>, vector<32x64xf32>
    %cst = arith.constant dense<0.000000e+00> : vector<16x64xf32>
    %5 = tpu.matmul %0, %4, %cst {dimension_numbers = #tpu.dot_dimension_numbers<[1], [0], [0], [1], [0, 0, 1, 1], [], []>, precision = #tpu.contract_precision<fp32>} : vector<16x32xf32>, vector<32x64xf32>, vector<16x64xf32> -> vector<16x64xf32>
    %c0_4 = arith.constant 0 : index
    %c0_5 = arith.constant 0 : index
    %6 = vector.load %arg8[%c0_4, %c0_5] : memref<1x64xf32, #tpu.memory_space<vmem>>, vector<1x64xf32>
    %7 = vector.broadcast %6 : vector<1x64xf32> to vector<16x64xf32>
    %8 = arith.addf %5, %7 : vector<16x64xf32>
    %cst_6 = arith.constant 5.000000e-01 : f32
    %9 = vector.broadcast %cst_6 : f32 to vector<16x64xf32>
    %10 = arith.mulf %9, %8 : vector<16x64xf32>
    %cst_7 = arith.constant 0.707106769 : f32
    %11 = vector.broadcast %cst_7 : f32 to vector<16x64xf32>
    %12 = arith.mulf %8, %11 : vector<16x64xf32>
    %13 = math.erf %12 : vector<16x64xf32>
    %cst_8 = arith.constant 1.000000e+00 : f32
    %14 = vector.broadcast %cst_8 : f32 to vector<16x64xf32>
    %15 = arith.addf %14, %13 : vector<16x64xf32>
    %16 = arith.mulf %10, %15 : vector<16x64xf32>
    %c0_9 = arith.constant 0 : index
    %c0_10 = arith.constant 0 : index
    %17 = vector.load %arg13[%c0_9, %c0_10] : memref<16x32xf32, #tpu.memory_space<vmem>>, vector<16x32xf32>
    %c0_11 = arith.constant 0 : index
    %c0_12 = arith.constant 0 : index
    %18 = vector.load %arg9[%c0_11, %c0_12] : memref<64x32xf32, #tpu.memory_space<vmem>>, vector<64x32xf32>
    %cst_13 = arith.constant dense<0.000000e+00> : vector<16x32xf32>
    %19 = tpu.matmul %16, %18, %cst_13 {dimension_numbers = #tpu.dot_dimension_numbers<[1], [0], [0], [1], [0, 0, 1, 1], [], []>, precision = #tpu.contract_precision<fp32>} : vector<16x64xf32>, vector<64x32xf32>, vector<16x32xf32> -> vector<16x32xf32>
    %20 = arith.addf %17, %19 : vector<16x32xf32>
    %c0_14 = arith.constant 0 : index
    %c0_15 = arith.constant 0 : index
    %21 = vector.load %arg13[%c0_14, %c0_15] : memref<16x32xf32, #tpu.memory_space<vmem>>, vector<16x32xf32>
    tpu.vector_store %arg13[%c0_14, %c0_15], %20 {strides = array<i32>} : memref<16x32xf32, #tpu.memory_space<vmem>>, vector<16x32xf32>,
    %c0_i32_16 = arith.constant 0 : i32
    %22 = arith.cmpi eq, %arg1, %c0_i32_16 : i32
    %23 = arith.extui %22 : i1 to i32
    %c0_i32_17 = arith.constant 0 : i32
    %24 = arith.cmpi ne, %23, %c0_i32_17 : i32
    scf.if %24 {
      %c0_18 = arith.constant 0 : index
      %c0_19 = arith.constant 0 : index
      %25 = vector.load %arg14[%c0_18, %c0_19] : memref<16x1xf32, #tpu.memory_space<vmem>>, vector<16x1xf32>
      %c0_20 = arith.constant 0 : index
      %c0_21 = arith.constant 0 : index
      %26 = vector.load %arg13[%c0_20, %c0_21] : memref<16x32xf32, #tpu.memory_space<vmem>>, vector<16x32xf32>
      %c0_22 = arith.constant 0 : index
      %c0_23 = arith.constant 0 : index
      %27 = vector.load %arg10[%c0_22, %c0_23] : memref<1x32xf32, #tpu.memory_space<vmem>>, vector<1x32xf32>
      %28 = vector.broadcast %27 : vector<1x32xf32> to vector<16x32xf32>
      %29 = arith.addf %26, %28 : vector<16x32xf32>
      %30 = vector.broadcast %25 : vector<16x1xf32> to vector<16x32xf32>
      %31 = arith.mulf %0, %30 : vector<16x32xf32>
      %cst_24 = arith.constant 1.000000e+00 : f32
      %32 = vector.broadcast %cst_24 : f32 to vector<16x1xf32>
      %33 = arith.subf %32, %25 : vector<16x1xf32>
      %34 = vector.broadcast %33 : vector<16x1xf32> to vector<16x32xf32>
      %35 = arith.mulf %29, %34 : vector<16x32xf32>
      %36 = arith.addf %31, %35 : vector<16x32xf32>
      %c0_25 = arith.constant 0 : index
      %c0_26 = arith.constant 0 : index
      %37 = vector.load %arg11[%c0_25, %c0_26] : memref<16x32xf32, #tpu.memory_space<vmem>>, vector<16x32xf32>
      tpu.vector_store %arg11[%c0_25, %c0_26], %36 {strides = array<i32>} : memref<16x32xf32, #tpu.memory_space<vmem>>, vector<16x32xf32>,
      %38 = vector.shape_cast %25 : vector<16x1xf32> to vector<16x1xf32>
      %39 = vector.broadcast %38 : vector<16x1xf32> to vector<16x128xf32>
      %c0_27 = arith.constant 0 : index
      %c0_28 = arith.constant 0 : index
      %40 = vector.load %arg12[%c0_27, %c0_28] : memref<16x128xf32, #tpu.memory_space<vmem>>, vector<16x128xf32>
      tpu.vector_store %arg12[%c0_27, %c0_28], %39 {strides = array<i32>} : memref<16x128xf32, #tpu.memory_space<vmem>>, vector<16x128xf32>,
    } else {
    }
    return
  }
  func.func @transform_0(%arg0: i32, %arg1: i32) -> (i32, i32) {
    %c0_i32 = arith.constant 0 : i32
    %c0_i32_0 = arith.constant 0 : i32
    return %arg0, %c0_i32 : i32, i32
  }
  func.func @transform_1(%arg0: i32, %arg1: i32) -> (i32, i32) {
    %c0_i32 = arith.constant 0 : i32
    %c0_i32_0 = arith.constant 0 : i32
    %c0_i32_1 = arith.constant 0 : i32
    return %c0_i32, %c0_i32_0 : i32, i32
  }
  func.func @transform_2(%arg0: i32, %arg1: i32) -> (i32, i32) {
    %c0_i32 = arith.constant 0 : i32
    %c0_i32_0 = arith.constant 0 : i32
    %c0_i32_1 = arith.constant 0 : i32
    return %c0_i32, %c0_i32_0 : i32, i32
  }
  func.func @transform_3(%arg0: i32, %arg1: i32) -> (i32, i32) {
    %c0_i32 = arith.constant 0 : i32
    %c0_i32_0 = arith.constant 0 : i32
    %c0_i32_1 = arith.constant 0 : i32
    return %c0_i32, %c0_i32_0 : i32, i32
  }
  func.func @transform_4(%arg0: i32, %arg1: i32) -> (i32, i32) {
    %c0_i32 = arith.constant 0 : i32
    %c0_i32_0 = arith.constant 0 : i32
    %c0_i32_1 = arith.constant 0 : i32
    return %c0_i32, %c0_i32_0 : i32, i32
  }
  func.func @transform_5(%arg0: i32, %arg1: i32) -> (i32, i32) {
    %c0_i32 = arith.constant 0 : i32
    %c0_i32_0 = arith.constant 0 : i32
    %c0_i32_1 = arith.constant 0 : i32
    return %c0_i32, %c0_i32_0 : i32, i32
  }
  func.func @transform_6(%arg0: i32, %arg1: i32) -> (i32, i32) {
    %c0_i32 = arith.constant 0 : i32
    %c0_i32_0 = arith.constant 0 : i32
    %c0_i32_1 = arith.constant 0 : i32
    return %c0_i32, %c0_i32_0 : i32, i32
  }
  func.func @transform_7(%arg0: i32, %arg1: i32) -> (i32, i32) {
    %c0_i32 = arith.constant 0 : i32
    %c0_i32_0 = arith.constant 0 : i32
    %c0_i32_1 = arith.constant 0 : i32
    return %c0_i32, %c0_i32_0 : i32, i32
  }
  func.func @transform_8(%arg0: i32, %arg1: i32) -> (i32, i32) {
    %c0_i32 = arith.constant 0 : i32
    %c0_i32_0 = arith.constant 0 : i32
    %c0_i32_1 = arith.constant 0 : i32
    return %c0_i32, %c0_i32_0 : i32, i32
  }
  func.func @transform_9(%arg0: i32, %arg1: i32) -> (i32, i32) {
    %c0_i32 = arith.constant 0 : i32
    %c0_i32_0 = arith.constant 0 : i32
    return %arg0, %c0_i32 : i32, i32
  }
  func.func @transform_10(%arg0: i32, %arg1: i32) -> (i32, i32) {
    %c0_i32 = arith.constant 0 : i32
    %c0_i32_0 = arith.constant 0 : i32
    return %arg0, %c0_i32 : i32, i32
  }
}

</mosaic_0001>

<llo_original>
// kernel: tpu_custom_call.1
$region0: #{tpu_custom_call.1}
  #allocation0 [shape = 'u32[]', space=smem, size = 0x4, offset = 0x4, fixed_abs, tag = 'smem constant byte address 0x4 - core index']
  #allocation1 [shape = 'u32[144,128]{1,0:T(1,128)}', space=vmem, size = 0x12000, scoped, tag = 'internal scratch']
  %s0 = inlined_call_operand.hbm [shape: f32[8,128], index: 0, kind: input, shape index: {}]
  %s1 = inlined_call_operand.hbm [shape: f32[8,128], index: 1, kind: output, shape index: {}]
  %s2 = sld [smem:[#allocation0]]
  $region18: #{tpu_custom_call.1} parent=0
    _
  %s4 = ssub.s32 1, %s2
  %s5 = scalar_select 0, %s4, %s2
  $region1: #{tpu_custom_call.1} parent=0
    #allocation2 [shape = 'u8[4096]{0}', space=vmem, size = 0x1000, scoped, tag = 'input window, operand 0, single buffered']
    #allocation3 [shape = 's32[1]{0}', space=sflag, size = 0x4, scoped, tag = 'scoped memory for tpu_custom_call.1']
    #allocation4 [shape = 's32[1]{0}', space=sflag, size = 0x4, scoped, tag = 'scoped memory for tpu_custom_call.1']
    #allocation5 [shape = 'u8[4096]{0}', space=vmem, size = 0x1000, scoped, tag = 'output window, operand 0, single buffered']
    %6 = vsyncpa [#allocation3], 0
    %7 = vsyncpa [#allocation4], 0
    // Predicated region
    $region2: #{tpu_custom_call.1} parent=1 // pred_check
      _
    $region3: #{tpu_custom_call.1} parent=1 // pred_check_branch
      %9 = sbr.rel (0) target = $region5
    $region4: #{tpu_custom_call.1} parent=1 // pred_region
      %s11 = ssub.s32 128, 128
      %12 = vsyncadd [#allocation3], %s11
      %s14 = sshll.u32 [#allocation2], 4
      %s15 = int_to_ptr.vmem [resolvable:$true] %s14
      %17 = dma.hbm_to_vmem [thread:$0]  %s0, 128, %s15, [#allocation3]
    $region5: #{tpu_custom_call.1} parent=1 // pred_fallthru
      _
    // Predicated region
    $region6: #{tpu_custom_call.1} parent=1 // pred_check
      _
    $region7: #{tpu_custom_call.1} parent=1 // pred_check_branch
      %19 = sbr.rel (0) target = $region9
    $region8: #{tpu_custom_call.1} parent=1 // pred_region
      %20 = dma.done [#allocation3], 128
    $region9: #{tpu_custom_call.1} parent=1 // pred_fallthru
      _
    %v21 = vld [vmem:[#allocation2] sm:$0xff]
    %22 = vst [vmem:[#allocation5] sm:$0xff] %v21
    // Predicated region
    $region10: #{tpu_custom_call.1} parent=1 // pred_check
      _
    $region11: #{tpu_custom_call.1} parent=1 // pred_check_branch
      %24 = sbr.rel (0) target = $region13
    $region12: #{tpu_custom_call.1} parent=1 // pred_region
      %s26 = ssub.s32 128, 128
      %27 = vsyncadd [#allocation4], %s26
      %s29 = sshll.u32 [#allocation5], 4
      %s30 = int_to_ptr.vmem [resolvable:$true] %s29
      %32 = dma.vmem_to_hbm [thread:$0]  %s30, 128, %s1, [#allocation4]
    $region13: #{tpu_custom_call.1} parent=1 // pred_fallthru
      _
    // Predicated region
    $region14: #{tpu_custom_call.1} parent=1 // pred_check
      _
    $region15: #{tpu_custom_call.1} parent=1 // pred_check_branch
      %34 = sbr.rel (0) target = $region17
    $region16: #{tpu_custom_call.1} parent=1 // pred_region
      %35 = dma.done [#allocation4], 128
    $region17: #{tpu_custom_call.1} parent=1 // pred_fallthru
      _
    %36 = vsyncpa [#allocation3], 1
    %37 = vsyncpa [#allocation4], 1

// kernel: tpu_custom_call.1
$region0: #{tpu_custom_call.1}
  #allocation0 [shape = 'u32[]', space=smem, size = 0x4, offset = 0x4, fixed_abs, tag = 'smem constant byte address 0x4 - core index']
  #allocation1 [shape = 'u32[144,128]{1,0:T(1,128)}', space=vmem, size = 0x12000, scoped, tag = 'internal scratch']
  #allocation2 [shape = 'f32[16,32]{1,0:T(8,128)}', space=vmem, size = 0x2000, scoped, tag = 'scratch operand']
  #allocation3 [shape = 'f32[16,1]{1,0:T(8,128)}', space=vmem, size = 0x2000, scoped, tag = 'scratch operand']
  #allocation4 [shape = 'f32[1,1]{1,0:T(1,128)S(1)}', space=vmem, size = 0x200, scoped, tag = 'scoped memory for tpu_custom_call.1']
  %s0 = inlined_call_operand.vmem [shape: f32[16,32], index: 0, kind: input, shape index: {}]
  %s1 = inlined_call_operand.vmem [shape: f32[32,32], index: 1, kind: input, shape index: {}]
  %s2 = inlined_call_operand.vmem [shape: f32[1,32], index: 2, kind: input, shape index: {}]
  %s3 = inlined_call_operand.vmem [shape: f32[1,32], index: 3, kind: input, shape index: {}]
  %s4 = inlined_call_operand.<no memory space> [shape: f32[1,1], index: 4, kind: input, shape index: {}]
  %s5 = inlined_call_operand.vmem [shape: f32[32,64], index: 5, kind: input, shape index: {}]
  %s6 = inlined_call_operand.vmem [shape: f32[1,64], index: 6, kind: input, shape index: {}]
  %s7 = inlined_call_operand.vmem [shape: f32[64,32], index: 7, kind: input, shape index: {}]
  %s8 = inlined_call_operand.vmem [shape: f32[1,32], index: 8, kind: input, shape index: {}]
  %s9 = inlined_call_operand.hbm [shape: f32[16,32], index: 9, kind: output, shape index: {0}]
  %s10 = inlined_call_operand.hbm [shape: f32[16,128], index: 10, kind: output, shape index: {1}]
  %11 = xla_tuple %s9, %s10
  %s12 = sld [smem:[#allocation0]]
  $region62: #{tpu_custom_call.1} parent=0
    _
  %s14 = ssub.s32 1, %s12
  %s15 = scalar_select 0, %s14, %s12
  %v16 = vstv %s4
  %17 = vst [vmem:[#allocation4] sm:$0x1] %v16
  $region1: #{tpu_custom_call.1} parent=0
    #allocation5 [shape = 'u8[8192]{0}', space=vmem, size = 0x2000, scoped, tag = 'output window, operand 0, single buffered']
    #allocation6 [shape = 's32[1]{0}', space=sflag, size = 0x4, scoped, tag = 'scoped memory for tpu_custom_call.1']
    #allocation7 [shape = 'u8[8192]{0}', space=vmem, size = 0x2000, scoped, tag = 'output window, operand 1, single buffered']
    #allocation8 [shape = 's32[1]{0}', space=sflag, size = 0x4, scoped, tag = 'scoped memory for tpu_custom_call.1']
    %18 = vsyncpa [#allocation6], 0
    %19 = vsyncpa [#allocation8], 0
    // Predicated region
    $region2: #{tpu_custom_call.1} parent=1 // pred_check
      _
    $region3: #{tpu_custom_call.1} parent=1 // pred_check_branch
      %21 = sbr.rel (0) target = $region5
    $region4: #{tpu_custom_call.1} parent=1 // pred_region
      _
    $region5: #{tpu_custom_call.1} parent=1 // pred_fallthru
      _
    // Predicated region
    $region6: #{tpu_custom_call.1} parent=1 // pred_check
      _
    $region7: #{tpu_custom_call.1} parent=1 // pred_check_branch
      %23 = sbr.rel (0) target = $region9
    $region8: #{tpu_custom_call.1} parent=1 // pred_region
      _
    $region9: #{tpu_custom_call.1} parent=1 // pred_fallthru
      _
    // Predicated region
    $region10: #{tpu_custom_call.1} parent=1 // pred_check
      _
    $region11: #{tpu_custom_call.1} parent=1 // pred_check_branch
      %25 = sbr.rel (0) target = $region13
    $region12: #{tpu_custom_call.1} parent=1 // pred_region
      _
    $region13: #{tpu_custom_call.1} parent=1 // pred_fallthru
      _
    // Predicated region
    $region14: #{tpu_custom_call.1} parent=1 // pred_check
      _
    $region15: #{tpu_custom_call.1} parent=1 // pred_check_branch
      %27 = sbr.rel (0) target = $region17
    $region16: #{tpu_custom_call.1} parent=1 // pred_region
      _
    $region17: #{tpu_custom_call.1} parent=1 // pred_fallthru
      _
    // Predicated region
    $region18: #{tpu_custom_call.1} parent=1 // pred_check
      _
    $region19: #{tpu_custom_call.1} parent=1 // pred_check_branch
      %29 = sbr.rel (0) target = $region21
    $region20: #{tpu_custom_call.1} parent=1 // pred_region
      _
    $region21: #{tpu_custom_call.1} parent=1 // pred_fallthru
      _
    // Predicated region
    $region22: #{tpu_custom_call.1} parent=1 // pred_check
      _
    $region23: #{tpu_custom_call.1} parent=1 // pred_check_branch
      %31 = sbr.rel (0) target = $region25
    $region24: #{tpu_custom_call.1} parent=1 // pred_region
      _
    $region25: #{tpu_custom_call.1} parent=1 // pred_fallthru
      _
    // Predicated region
    $region26: #{tpu_custom_call.1} parent=1 // pred_check
      _
    $region27: #{tpu_custom_call.1} parent=1 // pred_check_branch
      %33 = sbr.rel (0) target = $region29
    $region28: #{tpu_custom_call.1} parent=1 // pred_region
      _
    $region29: #{tpu_custom_call.1} parent=1 // pred_fallthru
      _
    // Predicated region
    $region30: #{tpu_custom_call.1} parent=1 // pred_check
      _
    $region31: #{tpu_custom_call.1} parent=1 // pred_check_branch
      %35 = sbr.rel (0) target = $region33
    $region32: #{tpu_custom_call.1} parent=1 // pred_region
      _
    $region33: #{tpu_custom_call.1} parent=1 // pred_fallthru
      _
    // Predicated region
    $region34: #{tpu_custom_call.1} parent=1 // pred_check
      _
    $region35: #{tpu_custom_call.1} parent=1 // pred_check_branch
      %37 = sbr.rel (0) target = $region37
    $region36: #{tpu_custom_call.1} parent=1 // pred_region
      _
    $region37: #{tpu_custom_call.1} parent=1 // pred_fallthru
      _
    %v38 = vld [vmem:[%s0] sm:$0xff]
    %v39 = vld [vmem:[%s0 + $0x8] sm:$0xff]
    %p40 = scmp.eq.s32.totalorder 0, 0
    // Predicated region
    $region38: #{tpu_custom_call.1} parent=1 // pred_check
      %p41 = pneg %p40
    $region39: #{tpu_custom_call.1} parent=1 // pred_check_branch
      %43 = sbr.rel (%p41) target = $region41
    $region40: #{tpu_custom_call.1} parent=1 // pred_region
      %v44 = vld [vmem:[%s1] sm:$0xff]
      %v45 = vld [vmem:[%s1 + $0x8] sm:$0xff]
      %v46 = vld [vmem:[%s1 + $0x10] sm:$0xff]
      %v47 = vld [vmem:[%s1 + $0x18] sm:$0xff]
      %v48 = vld [vmem:[%s2] sm:$0x1]
      %v50 = vlaneseq
      %v51 = vshrl.u32 %v50, 7
      %v52 = vsub.s32 0, %v51
      %v53 = vrot.slane %v48, %v52
      %vm55 = vcmask 261120
      %v57 = vsel %vm55, %v38, 0
      %v60 = vsel %vm55, %v39, 0
      %62 = vmatprep.subr.mxu0 0.0
      %v63 = vand.u32 %v44, 4294901760
      %64 = vmatpush1.msra.mxu0 %v63
      %65 = vmatprep.subr.mxu0 0.0
      %v66 = vand.u32 %v45, 4294901760
      %67 = vmatpush1.msra.mxu0 %v66
      %68 = vmatprep.subr.mxu0 0.0
      %v69 = vand.u32 %v46, 4294901760
      %70 = vmatpush1.msra.mxu0 %v69
      %71 = vmatprep.subr.mxu0 0.0
      %v72 = vand.u32 %v47, 4294901760
      %73 = vmatpush1.msra.mxu0 %v72
      %74 = vmatprep.subr.mxu0 0.0
      %75 = vmatpush1.msra.mxu0 0.0
      %76 = vmatprep.subr.mxu0 0.0
      %77 = vmatpush1.msra.mxu0 0.0
      %78 = vmatprep.subr.mxu0 0.0
      %79 = vmatpush1.msra.mxu0 0.0
      %80 = vmatprep.subr.mxu0 0.0
      %81 = vmatpush1.msra.mxu0 0.0
      %82 = vmatprep.subr.mxu0 0.0
      %83 = vmatpush1.msra.mxu0 0.0
      %84 = vmatprep.subr.mxu0 0.0
      %85 = vmatpush1.msra.mxu0 0.0
      %86 = vmatprep.subr.mxu0 0.0
      %87 = vmatpush1.msra.mxu0 0.0
      %88 = vmatprep.subr.mxu0 0.0
      %89 = vmatpush1.msra.mxu0 0.0
      %90 = vmatprep.subr.mxu0 0.0
      %91 = vmatpush1.msra.mxu0 0.0
      %92 = vmatprep.subr.mxu0 0.0
      %93 = vmatpush1.msra.mxu0 0.0
      %94 = vmatprep.subr.mxu0 0.0
      %95 = vmatpush1.msra.mxu0 0.0
      %96 = vmatprep.subr.mxu0 0.0
      %97 = vmatpush1.msra.mxu0 0.0
      %98 = vmatprep.subr.mxu0 0.0
      %99 = vmatpush1.msra.mxu0 0.0
      %100 = vmatprep.subr.mxu0 0.0
      %101 = vmatpush1.msra.mxu0 0.0
      %102 = vmatprep.subr.mxu0 0.0
      %103 = vmatpush1.msra.mxu0 0.0
      %104 = vmatprep.subr.mxu0 0.0
      %105 = vmatpush1.msra.mxu0 0.0
      %106 = vmatprep.subr.mxu0 0.0
      %107 = vmatpush1.msra.mxu0 0.0
      %108 = vmatprep.subr.mxu0 0.0
      %109 = vmatpush1.msra.mxu0 0.0
      %110 = vmatprep.subr.mxu0 0.0
      %111 = vmatpush1.msra.mxu0 0.0
      %112 = vmatprep.subr.mxu0 0.0
      %113 = vmatpush1.msra.mxu0 0.0
      %114 = vmatprep.subr.mxu0 0.0
      %115 = vmatpush1.msra.mxu0 0.0
      %116 = vmatprep.subr.mxu0 0.0
      %117 = vmatpush1.msra.mxu0 0.0
      %118 = vmatprep.subr.mxu0 0.0
      %119 = vmatpush1.msra.mxu0 0.0
      %120 = vmatprep.subr.mxu0 0.0
      %121 = vmatpush1.msra.mxu0 0.0
      %122 = vmatprep.subr.mxu0 0.0
      %123 = vmatpush1.msra.mxu0 0.0
      %124 = vmatprep.subr.mxu0 0.0
      %125 = vmatpush1.msra.mxu0 0.0
      %126 = vmatprep.subr.mxu0 0.0
      %127 = vmatpush1.msra.mxu0 0.0
      %128 = vmatprep.subr.mxu0 0.0
      %129 = vmatpush1.msra.mxu0 0.0
      %130 = vmatprep.mubr.f32.mxu0 0.0
      %v131 = vand.u32 %v57, 4294901760
      %v132 = vsub.f32 %v57, %v131
      %v133 = vand.u32 %v132, 4294901760
      %v134 = vsub.f32 %v132, %v133
      %v135 = vand.u32 %v134, 4294901760
      %136 = vmatmul.mubr.f32.gmra.mrb[0].mxu0 %v135
      %v137 = vpop.f32.mrb[0].mxu0
      %v138 = vadd.f32 %v53, %v137
      %v139 = vpop.f32.mrb[0].mxu0
      %140 = vmatprep.mubr.f32.mxu0 0.0
      %v141 = vand.u32 %v60, 4294901760
      %v142 = vsub.f32 %v60, %v141
      %v143 = vand.u32 %v142, 4294901760
      %v144 = vsub.f32 %v142, %v143
      %v145 = vand.u32 %v144, 4294901760
      %146 = vmatmul.mubr.f32.gmra.mrb[0].mxu0 %v145
      %v147 = vpop.f32.mrb[0].mxu0
      %v148 = vadd.f32 %v53, %v147
      %v149 = vpop.f32.mrb[0].mxu0
      %150 = vdwg.mxu0
      %151 = vmatprep.subr.mxu0 0.0
      %v152 = vand.u32 %v44, 4294901760
      %v153 = vsub.f32 %v44, %v152
      %v154 = vand.u32 %v153, 4294901760
      %v155 = vsub.f32 %v153, %v154
      %v156 = vand.u32 %v155, 4294901760
      %157 = vmatpush1.msra.mxu0 %v156
      %158 = vmatprep.subr.mxu0 0.0
      %v159 = vand.u32 %v45, 4294901760
      %v160 = vsub.f32 %v45, %v159
      %v161 = vand.u32 %v160, 4294901760
      %v162 = vsub.f32 %v160, %v161
      %v163 = vand.u32 %v162, 4294901760
      %164 = vmatpush1.msra.mxu0 %v163
      %165 = vmatprep.subr.mxu0 0.0
      %v166 = vand.u32 %v46, 4294901760
      %v167 = vsub.f32 %v46, %v166
      %v168 = vand.u32 %v167, 4294901760
      %v169 = vsub.f32 %v167, %v168
      %v170 = vand.u32 %v169, 4294901760
      %171 = vmatpush1.msra.mxu0 %v170
      %172 = vmatprep.subr.mxu0 0.0
      %v173 = vand.u32 %v47, 4294901760
      %v174 = vsub.f32 %v47, %v173
      %v175 = vand.u32 %v174, 4294901760
      %v176 = vsub.f32 %v174, %v175
      %v177 = vand.u32 %v176, 4294901760
      %178 = vmatpush1.msra.mxu0 %v177
      %179 = vmatprep.subr.mxu0 0.0
      %180 = vmatpush1.msra.mxu0 0.0
      %181 = vmatprep.subr.mxu0 0.0
      %182 = vmatpush1.msra.mxu0 0.0
      %183 = vmatprep.subr.mxu0 0.0
      %184 = vmatpush1.msra.mxu0 0.0
      %185 = vmatprep.subr.mxu0 0.0
      %186 = vmatpush1.msra.mxu0 0.0
      %187 = vmatprep.subr.mxu0 0.0
      %188 = vmatpush1.msra.mxu0 0.0
      %189 = vmatprep.subr.mxu0 0.0
      %190 = vmatpush1.msra.mxu0 0.0
      %191 = vmatprep.subr.mxu0 0.0
      %192 = vmatpush1.msra.mxu0 0.0
      %193 = vmatprep.subr.mxu0 0.0
      %194 = vmatpush1.msra.mxu0 0.0
      %195 = vmatprep.subr.mxu0 0.0
      %196 = vmatpush1.msra.mxu0 0.0
      %197 = vmatprep.subr.mxu0 0.0
      %198 = vmatpush1.msra.mxu0 0.0
      %199 = vmatprep.subr.mxu0 0.0
      %200 = vmatpush1.msra.mxu0 0.0
      %201 = vmatprep.subr.mxu0 0.0
      %202 = vmatpush1.msra.mxu0 0.0
      %203 = vmatprep.subr.mxu0 0.0
      %204 = vmatpush1.msra.mxu0 0.0
      %205 = vmatprep.subr.mxu0 0.0
      %206 = vmatpush1.msra.mxu0 0.0
      %207 = vmatprep.subr.mxu0 0.0
      %208 = vmatpush1.msra.mxu0 0.0
      %209 = vmatprep.subr.mxu0 0.0
      %210 = vmatpush1.msra.mxu0 0.0
      %211 = vmatprep.subr.mxu0 0.0
      %212 = vmatpush1.msra.mxu0 0.0
      %213 = vmatprep.subr.mxu0 0.0
      %214 = vmatpush1.msra.mxu0 0.0
      %215 = vmatprep.subr.mxu0 0.0
      %216 = vmatpush1.msra.mxu0 0.0
      %217 = vmatprep.subr.mxu0 0.0
      %218 = vmatpush1.msra.mxu0 0.0
      %219 = vmatprep.subr.mxu0 0.0
      %220 = vmatpush1.msra.mxu0 0.0
      %221 = vmatprep.subr.mxu0 0.0
      %222 = vmatpush1.msra.mxu0 0.0
      %223 = vmatprep.subr.mxu0 0.0
      %224 = vmatpush1.msra.mxu0 0.0
      %225 = vmatprep.subr.mxu0 0.0
      %226 = vmatpush1.msra.mxu0 0.0
      %227 = vmatprep.subr.mxu0 0.0
      %228 = vmatpush1.msra.mxu0 0.0
      %229 = vmatprep.subr.mxu0 0.0
      %230 = vmatpush1.msra.mxu0 0.0
      %231 = vmatprep.subr.mxu0 0.0
      %232 = vmatpush1.msra.mxu0 0.0
      %233 = vmatprep.subr.mxu0 0.0
      %234 = vmatpush1.msra.mxu0 0.0
      %235 = vmatprep.mubr.f32.mxu0 0.0
      %v236 = vand.u32 %v57, 4294901760
      %237 = vmatmul.mubr.f32.gmra.mrb[0].mxu0 %v236
      %v238 = vpop.f32.mrb[0].mxu0
      %v239 = vadd.f32 %v138, %v238
      %v240 = vpop.f32.mrb[0].mxu0
      %241 = vmatprep.mubr.f32.mxu0 0.0
      %v242 = vand.u32 %v60, 4294901760
      %243 = vmatmul.mubr.f32.gmra.mrb[0].mxu0 %v242
      %v244 = vpop.f32.mrb[0].mxu0
      %v245 = vadd.f32 %v148, %v244
      %v246 = vpop.f32.mrb[0].mxu0
      %247 = vdwg.mxu0
      %248 = vmatprep.subr.mxu0 0.0
      %v249 = vand.u32 %v44, 4294901760
      %v250 = vsub.f32 %v44, %v249
      %251 = vmatpush1.msra.mxu0 %v250
      %252 = vmatprep.subr.mxu0 0.0
      %v253 = vand.u32 %v45, 4294901760
      %v254 = vsub.f32 %v45, %v253
      %255 = vmatpush1.msra.mxu0 %v254
      %256 = vmatprep.subr.mxu0 0.0
      %v257 = vand.u32 %v46, 4294901760
      %v258 = vsub.f32 %v46, %v257
      %259 = vmatpush1.msra.mxu0 %v258
      %260 = vmatprep.subr.mxu0 0.0
      %v261 = vand.u32 %v47, 4294901760
      %v262 = vsub.f32 %v47, %v261
      %263 = vmatpush1.msra.mxu0 %v262
      %264 = vmatprep.subr.mxu0 0.0
      %265 = vmatpush1.msra.mxu0 0.0
      %266 = vmatprep.subr.mxu0 0.0
      %267 = vmatpush1.msra.mxu0 0.0
      %268 = vmatprep.subr.mxu0 0.0
      %269 = vmatpush1.msra.mxu0 0.0
      %270 = vmatprep.subr.mxu0 0.0
      %271 = vmatpush1.msra.mxu0 0.0
      %272 = vmatprep.subr.mxu0 0.0
      %273 = vmatpush1.msra.mxu0 0.0
      %274 = vmatprep.subr.mxu0 0.0
      %275 = vmatpush1.msra.mxu0 0.0
      %276 = vmatprep.subr.mxu0 0.0
      %277 = vmatpush1.msra.mxu0 0.0
      %278 = vmatprep.subr.mxu0 0.0
      %279 = vmatpush1.msra.mxu0 0.0
      %280 = vmatprep.subr.mxu0 0.0
      %281 = vmatpush1.msra.mxu0 0.0
      %282 = vmatprep.subr.mxu0 0.0
      %283 = vmatpush1.msra.mxu0 0.0
      %284 = vmatprep.subr.mxu0 0.0
      %285 = vmatpush1.msra.mxu0 0.0
      %286 = vmatprep.subr.mxu0 0.0
      %287 = vmatpush1.msra.mxu0 0.0
      %288 = vmatprep.subr.mxu0 0.0
      %289 = vmatpush1.msra.mxu0 0.0
      %290 = vmatprep.subr.mxu0 0.0
      %291 = vmatpush1.msra.mxu0 0.0
      %292 = vmatprep.subr.mxu0 0.0
      %293 = vmatpush1.msra.mxu0 0.0
      %294 = vmatprep.subr.mxu0 0.0
      %295 = vmatpush1.msra.mxu0 0.0
      %296 = vmatprep.subr.mxu0 0.0
      %297 = vmatpush1.msra.mxu0 0.0
      %298 = vmatprep.subr.mxu0 0.0
      %299 = vmatpush1.msra.mxu0 0.0
      %300 = vmatprep.subr.mxu0 0.0
      %301 = vmatpush1.msra.mxu0 0.0
      %302 = vmatprep.subr.mxu0 0.0
      %303 = vmatpush1.msra.mxu0 0.0
      %304 = vmatprep.subr.mxu0 0.0
      %305 = vmatpush1.msra.mxu0 0.0
      %306 = vmatprep.subr.mxu0 0.0
      %307 = vmatpush1.msra.mxu0 0.0
      %308 = vmatprep.subr.mxu0 0.0
      %309 = vmatpush1.msra.mxu0 0.0
      %310 = vmatprep.subr.mxu0 0.0
      %311 = vmatpush1.msra.mxu0 0.0
      %312 = vmatprep.subr.mxu0 0.0
      %313 = vmatpush1.msra.mxu0 0.0
      %314 = vmatprep.subr.mxu0 0.0
      %315 = vmatpush1.msra.mxu0 0.0
      %316 = vmatprep.subr.mxu0 0.0
      %317 = vmatpush1.msra.mxu0 0.0
      %318 = vmatprep.subr.mxu0 0.0
      %319 = vmatpush1.msra.mxu0 0.0
      %320 = vmatprep.mubr.f32.mxu0 0.0
      %v321 = vand.u32 %v57, 4294901760
      %v322 = vsub.f32 %v57, %v321
      %323 = vmatmul.mubr.f32.gmra.mrb[0].mxu0 %v322
      %v324 = vpop.f32.mrb[0].mxu0
      %v325 = vadd.f32 %v239, %v324
      %v326 = vpop.f32.mrb[0].mxu0
      %327 = vmatprep.mubr.f32.mxu0 0.0
      %v328 = vand.u32 %v60, 4294901760
      %v329 = vsub.f32 %v60, %v328
      %330 = vmatmul.mubr.f32.gmra.mrb[0].mxu0 %v329
      %v331 = vpop.f32.mrb[0].mxu0
      %v332 = vadd.f32 %v245, %v331
      %v333 = vpop.f32.mrb[0].mxu0
      %334 = vdwg.mxu0
      %335 = vmatprep.subr.mxu0 0.0
      %v336 = vand.u32 %v44, 4294901760
      %337 = vmatpush1.msra.mxu0 %v336
      %338 = vmatprep.subr.mxu0 0.0
      %v339 = vand.u32 %v45, 4294901760
      %340 = vmatpush1.msra.mxu0 %v339
      %341 = vmatprep.subr.mxu0 0.0
      %v342 = vand.u32 %v46, 4294901760
      %343 = vmatpush1.msra.mxu0 %v342
      %344 = vmatprep.subr.mxu0 0.0
      %v345 = vand.u32 %v47, 4294901760
      %346 = vmatpush1.msra.mxu0 %v345
      %347 = vmatprep.subr.mxu0 0.0
      %348 = vmatpush1.msra.mxu0 0.0
      %349 = vmatprep.subr.mxu0 0.0
      %350 = vmatpush1.msra.mxu0 0.0
      %351 = vmatprep.subr.mxu0 0.0
      %352 = vmatpush1.msra.mxu0 0.0
      %353 = vmatprep.subr.mxu0 0.0
      %354 = vmatpush1.msra.mxu0 0.0
      %355 = vmatprep.subr.mxu0 0.0
      %356 = vmatpush1.msra.mxu0 0.0
      %357 = vmatprep.subr.mxu0 0.0
      %358 = vmatpush1.msra.mxu0 0.0
      %359 = vmatprep.subr.mxu0 0.0
      %360 = vmatpush1.msra.mxu0 0.0
      %361 = vmatprep.subr.mxu0 0.0
      %362 = vmatpush1.msra.mxu0 0.0
      %363 = vmatprep.subr.mxu0 0.0
      %364 = vmatpush1.msra.mxu0 0.0
      %365 = vmatprep.subr.mxu0 0.0
      %366 = vmatpush1.msra.mxu0 0.0
      %367 = vmatprep.subr.mxu0 0.0
      %368 = vmatpush1.msra.mxu0 0.0
      %369 = vmatprep.subr.mxu0 0.0
      %370 = vmatpush1.msra.mxu0 0.0
      %371 = vmatprep.subr.mxu0 0.0
      %372 = vmatpush1.msra.mxu0 0.0
      %373 = vmatprep.subr.mxu0 0.0
      %374 = vmatpush1.msra.mxu0 0.0
      %375 = vmatprep.subr.mxu0 0.0
      %376 = vmatpush1.msra.mxu0 0.0
      %377 = vmatprep.subr.mxu0 0.0
      %378 = vmatpush1.msra.mxu0 0.0
      %379 = vmatprep.subr.mxu0 0.0
      %380 = vmatpush1.msra.mxu0 0.0
      %381 = vmatprep.subr.mxu0 0.0
      %382 = vmatpush1.msra.mxu0 0.0
      %383 = vmatprep.subr.mxu0 0.0
      %384 = vmatpush1.msra.mxu0 0.0
      %385 = vmatprep.subr.mxu0 0.0
      %386 = vmatpush1.msra.mxu0 0.0
      %387 = vmatprep.subr.mxu0 0.0
      %388 = vmatpush1.msra.mxu0 0.0
      %389 = vmatprep.subr.mxu0 0.0
      %390 = vmatpush1.msra.mxu0 0.0
      %391 = vmatprep.subr.mxu0 0.0
      %392 = vmatpush1.msra.mxu0 0.0
      %393 = vmatprep.subr.mxu0 0.0
      %394 = vmatpush1.msra.mxu0 0.0
      %395 = vmatprep.subr.mxu0 0.0
      %396 = vmatpush1.msra.mxu0 0.0
      %397 = vmatprep.subr.mxu0 0.0
      %398 = vmatpush1.msra.mxu0 0.0
      %399 = vmatprep.subr.mxu0 0.0
      %400 = vmatpush1.msra.mxu0 0.0
      %401 = vmatprep.subr.mxu0 0.0
      %402 = vmatpush1.msra.mxu0 0.0
      %403 = vmatprep.mubr.f32.mxu0 0.0
      %v404 = vand.u32 %v57, 4294901760
      %v405 = vsub.f32 %v57, %v404
      %v406 = vand.u32 %v405, 4294901760
      %407 = vmatmul.mubr.f32.gmra.mrb[0].mxu0 %v406
      %v408 = vpop.f32.mrb[0].mxu0
      %v409 = vadd.f32 %v325, %v408
      %v410 = vpop.f32.mrb[0].mxu0
      %411 = vmatprep.mubr.f32.mxu0 0.0
      %v412 = vand.u32 %v60, 4294901760
      %v413 = vsub.f32 %v60, %v412
      %v414 = vand.u32 %v413, 4294901760
      %415 = vmatmul.mubr.f32.gmra.mrb[0].mxu0 %v414
      %v416 = vpop.f32.mrb[0].mxu0
      %v417 = vadd.f32 %v332, %v416
      %v418 = vpop.f32.mrb[0].mxu0
      %419 = vdwg.mxu0
      %420 = vmatprep.subr.mxu0 0.0
      %v421 = vand.u32 %v44, 4294901760
      %v422 = vsub.f32 %v44, %v421
      %v423 = vand.u32 %v422, 4294901760
      %424 = vmatpush1.msra.mxu0 %v423
      %425 = vmatprep.subr.mxu0 0.0
      %v426 = vand.u32 %v45, 4294901760
      %v427 = vsub.f32 %v45, %v426
      %v428 = vand.u32 %v427, 4294901760
      %429 = vmatpush1.msra.mxu0 %v428
      %430 = vmatprep.subr.mxu0 0.0
      %v431 = vand.u32 %v46, 4294901760
      %v432 = vsub.f32 %v46, %v431
      %v433 = vand.u32 %v432, 4294901760
      %434 = vmatpush1.msra.mxu0 %v433
      %435 = vmatprep.subr.mxu0 0.0
      %v436 = vand.u32 %v47, 4294901760
      %v437 = vsub.f32 %v47, %v436
      %v438 = vand.u32 %v437, 4294901760
      %439 = vmatpush1.msra.mxu0 %v438
      %440 = vmatprep.subr.mxu0 0.0
      %441 = vmatpush1.msra.mxu0 0.0
      %442 = vmatprep.subr.mxu0 0.0
      %443 = vmatpush1.msra.mxu0 0.0
      %444 = vmatprep.subr.mxu0 0.0
      %445 = vmatpush1.msra.mxu0 0.0
      %446 = vmatprep.subr.mxu0 0.0
      %447 = vmatpush1.msra.mxu0 0.0
      %448 = vmatprep.subr.mxu0 0.0
      %449 = vmatpush1.msra.mxu0 0.0
      %450 = vmatprep.subr.mxu0 0.0
      %451 = vmatpush1.msra.mxu0 0.0
      %452 = vmatprep.subr.mxu0 0.0
      %453 = vmatpush1.msra.mxu0 0.0
      %454 = vmatprep.subr.mxu0 0.0
      %455 = vmatpush1.msra.mxu0 0.0
      %456 = vmatprep.subr.mxu0 0.0
      %457 = vmatpush1.msra.mxu0 0.0
      %458 = vmatprep.subr.mxu0 0.0
      %459 = vmatpush1.msra.mxu0 0.0
      %460 = vmatprep.subr.mxu0 0.0
      %461 = vmatpush1.msra.mxu0 0.0
      %462 = vmatprep.subr.mxu0 0.0
      %463 = vmatpush1.msra.mxu0 0.0
      %464 = vmatprep.subr.mxu0 0.0
      %465 = vmatpush1.msra.mxu0 0.0
      %466 = vmatprep.subr.mxu0 0.0
      %467 = vmatpush1.msra.mxu0 0.0
      %468 = vmatprep.subr.mxu0 0.0
      %469 = vmatpush1.msra.mxu0 0.0
      %470 = vmatprep.subr.mxu0 0.0
      %471 = vmatpush1.msra.mxu0 0.0
      %472 = vmatprep.subr.mxu0 0.0
      %473 = vmatpush1.msra.mxu0 0.0
      %474 = vmatprep.subr.mxu0 0.0
      %475 = vmatpush1.msra.mxu0 0.0
      %476 = vmatprep.subr.mxu0 0.0
      %477 = vmatpush1.msra.mxu0 0.0
      %478 = vmatprep.subr.mxu0 0.0
      %479 = vmatpush1.msra.mxu0 0.0
      %480 = vmatprep.subr.mxu0 0.0
      %481 = vmatpush1.msra.mxu0 0.0
      %482 = vmatprep.subr.mxu0 0.0
      %483 = vmatpush1.msra.mxu0 0.0
      %484 = vmatprep.subr.mxu0 0.0
      %485 = vmatpush1.msra.mxu0 0.0
      %486 = vmatprep.subr.mxu0 0.0
      %487 = vmatpush1.msra.mxu0 0.0
      %488 = vmatprep.subr.mxu0 0.0
      %489 = vmatpush1.msra.mxu0 0.0
      %490 = vmatprep.subr.mxu0 0.0
      %491 = vmatpush1.msra.mxu0 0.0
      %492 = vmatprep.subr.mxu0 0.0
      %493 = vmatpush1.msra.mxu0 0.0
      %494 = vmatprep.subr.mxu0 0.0
      %495 = vmatpush1.msra.mxu0 0.0
      %496 = vmatprep.mubr.f32.mxu0 0.0
      %v497 = vand.u32 %v57, 4294901760
      %498 = vmatmul.mubr.f32.gmra.mrb[0].mxu0 %v497
      %v499 = vpop.f32.mrb[0].mxu0
      %v500 = vadd.f32 %v409, %v499
      %v501 = vpop.f32.mrb[0].mxu0
      %502 = vmatprep.mubr.f32.mxu0 0.0
      %v503 = vand.u32 %v60, 4294901760
      %504 = vmatmul.mubr.f32.gmra.mrb[0].mxu0 %v503
      %v505 = vpop.f32.mrb[0].mxu0
      %v506 = vadd.f32 %v417, %v505
      %v507 = vpop.f32.mrb[0].mxu0
      %508 = vdwg.mxu0
      %509 = vmatprep.subr.mxu0 0.0
      %v510 = vand.u32 %v44, 4294901760
      %511 = vmatpush1.msra.mxu0 %v510
      %512 = vmatprep.subr.mxu0 0.0
      %v513 = vand.u32 %v45, 4294901760
      %514 = vmatpush1.msra.mxu0 %v513
      %515 = vmatprep.subr.mxu0 0.0
      %v516 = vand.u32 %v46, 4294901760
      %517 = vmatpush1.msra.mxu0 %v516
      %518 = vmatprep.subr.mxu0 0.0
      %v519 = vand.u32 %v47, 4294901760
      %520 = vmatpush1.msra.mxu0 %v519
      %521 = vmatprep.subr.mxu0 0.0
      %522 = vmatpush1.msra.mxu0 0.0
      %523 = vmatprep.subr.mxu0 0.0
      %524 = vmatpush1.msra.mxu0 0.0
      %525 = vmatprep.subr.mxu0 0.0
      %526 = vmatpush1.msra.mxu0 0.0
      %527 = vmatprep.subr.mxu0 0.0
      %528 = vmatpush1.msra.mxu0 0.0
      %529 = vmatprep.subr.mxu0 0.0
      %530 = vmatpush1.msra.mxu0 0.0
      %531 = vmatprep.subr.mxu0 0.0
      %532 = vmatpush1.msra.mxu0 0.0
      %533 = vmatprep.subr.mxu0 0.0
      %534 = vmatpush1.msra.mxu0 0.0
      %535 = vmatprep.subr.mxu0 0.0
      %536 = vmatpush1.msra.mxu0 0.0
      %537 = vmatprep.subr.mxu0 0.0
      %538 = vmatpush1.msra.mxu0 0.0
      %539 = vmatprep.subr.mxu0 0.0
      %540 = vmatpush1.msra.mxu0 0.0
      %541 = vmatprep.subr.mxu0 0.0
      %542 = vmatpush1.msra.mxu0 0.0
      %543 = vmatprep.subr.mxu0 0.0
      %544 = vmatpush1.msra.mxu0 0.0
      %545 = vmatprep.subr.mxu0 0.0
      %546 = vmatpush1.msra.mxu0 0.0
      %547 = vmatprep.subr.mxu0 0.0
      %548 = vmatpush1.msra.mxu0 0.0
      %549 = vmatprep.subr.mxu0 0.0
      %550 = vmatpush1.msra.mxu0 0.0
      %551 = vmatprep.subr.mxu0 0.0
      %552 = vmatpush1.msra.mxu0 0.0
      %553 = vmatprep.subr.mxu0 0.0
      %554 = vmatpush1.msra.mxu0 0.0
      %555 = vmatprep.subr.mxu0 0.0
      %556 = vmatpush1.msra.mxu0 0.0
      %557 = vmatprep.subr.mxu0 0.0
      %558 = vmatpush1.msra.mxu0 0.0
      %559 = vmatprep.subr.mxu0 0.0
      %560 = vmatpush1.msra.mxu0 0.0
      %561 = vmatprep.subr.mxu0 0.0
      %562 = vmatpush1.msra.mxu0 0.0
      %563 = vmatprep.subr.mxu0 0.0
      %564 = vmatpush1.msra.mxu0 0.0
      %565 = vmatprep.subr.mxu0 0.0
      %566 = vmatpush1.msra.mxu0 0.0
      %567 = vmatprep.subr.mxu0 0.0
      %568 = vmatpush1.msra.mxu0 0.0
      %569 = vmatprep.subr.mxu0 0.0
      %570 = vmatpush1.msra.mxu0 0.0
      %571 = vmatprep.subr.mxu0 0.0
      %572 = vmatpush1.msra.mxu0 0.0
      %573 = vmatprep.subr.mxu0 0.0
      %574 = vmatpush1.msra.mxu0 0.0
      %575 = vmatprep.subr.mxu0 0.0
      %576 = vmatpush1.msra.mxu0 0.0
      %577 = vmatprep.mubr.f32.mxu0 0.0
      %v578 = vand.u32 %v57, 4294901760
      %579 = vmatmul.mubr.f32.gmra.mrb[0].mxu0 %v578
      %v580 = vpop.f32.mrb[0].mxu0
      %v581 = vadd.f32 %v500, %v580
      %v582 = vpop.f32.mrb[0].mxu0
      %583 = vmatprep.mubr.f32.mxu0 0.0
      %v584 = vand.u32 %v60, 4294901760
      %585 = vmatmul.mubr.f32.gmra.mrb[0].mxu0 %v584
      %v586 = vpop.f32.mrb[0].mxu0
      %v587 = vadd.f32 %v506, %v586
      %v588 = vpop.f32.mrb[0].mxu0
      %589 = vdwg.mxu0
      %v590 = vmul.f32 %v581, 0.5
      %v591 = vmul.f32 %v587, 0.5
      %v592 = vmul.f32 %v581, 0.70710677
      %v593 = vmul.f32 %v587, 0.70710677
      %v594 = verf.f32.pop %v592
      %v595 = verf.f32.pop %v593
      %v596 = vadd.f32 %v594, 1.0
      %v597 = vadd.f32 %v595, 1.0
      %v598 = vmul.f32 %v590, %v596
      %v599 = vmul.f32 %v591, %v597
      %v600 = vld [vmem:[%s3] sm:$0x1]
      %v602 = vlaneseq
      %v603 = vshrl.u32 %v602, 7
      %v604 = vsub.s32 0, %v603
      %v605 = vrot.slane %v600, %v604
      %v607 = vmul.f32 %v598, %v605
      %v608 = vmul.f32 %v599, %v605
      %v609 = vsel %vm55, %v607, 0.0
      %610 = vadd.xlane.f32.xlu0 %v609
      %v611 = vpop.xlane.xlu0 %610
      %v612 = vsel %vm55, %v608, 0.0
      %613 = vadd.xlane.f32.xlu0 %v612
      %v614 = vpop.xlane.xlu0 %613
      %v615 = vld [vmem:[#allocation4] sm:$0x1]
      %v617 = vlaneseq
      %v618 = vshrl.u32 %v617, 7
      %v619 = vsub.s32 0, %v618
      %v620 = vrot.slane %v615, %v619
      %v622 = vadd.f32 %v611, %v620
      %v623 = vadd.f32 %v614, %v620
      %v624 = vxor.u32 %v622, 2147483648
      %v625 = vxor.u32 %v623, 2147483648
      %v626 = vmul.f32 %v624, 1.442695
      %v627 = vpow.pop %v626
      %v628 = vmul.f32 %v625, 1.442695
      %v629 = vpow.pop %v628
      %v630 = vadd.f32 %v627, 1.0
      %v631 = vadd.f32 %v629, 1.0
      %v632 = vrcp.pop %v630
      %v633 = vmul.f32 1.0, %v632
      %v634 = vrcp.pop %v631
      %v635 = vmul.f32 1.0, %v634
      %vm636 = vcmask 7168
      %637 = vst.msk [vmem:[#allocation3] sm:$0xff] %vm636, %v633
      %638 = vst.msk [vmem:[#allocation3 + $0x8] sm:$0xff] %vm636, %v635
      %639 = vst.msk [vmem:[#allocation2] sm:$0xff] %vm55, 0.0
      %640 = vst.msk [vmem:[#allocation2 + $0x8] sm:$0xff] %vm55, 0.0
    $region41: #{tpu_custom_call.1} parent=1 // pred_fallthru
      _
    %v641 = vld [vmem:[%s5] sm:$0xff]
    %v642 = vld [vmem:[%s5 + $0x8] sm:$0xff]
    %v643 = vld [vmem:[%s5 + $0x10] sm:$0xff]
    %v644 = vld [vmem:[%s5 + $0x18] sm:$0xff]
    %v645 = vld [vmem:[%s6] sm:$0x1]
    %v647 = vlaneseq
    %v648 = vshrl.u32 %v647, 7
    %v649 = vsub.s32 0, %v648
    %v650 = vrot.slane %v645, %v649
    %vm652 = vcmask 261120
    %v654 = vsel %vm652, %v38, 0
    %v657 = vsel %vm652, %v39, 0
    %659 = vmatprep.subr.mxu0 0.0
    %v660 = vand.u32 %v641, 4294901760
    %661 = vmatpush1.msra.mxu0 %v660
    %662 = vmatprep.subr.mxu0 0.0
    %v663 = vand.u32 %v642, 4294901760
    %664 = vmatpush1.msra.mxu0 %v663
    %665 = vmatprep.subr.mxu0 0.0
    %v666 = vand.u32 %v643, 4294901760
    %667 = vmatpush1.msra.mxu0 %v666
    %668 = vmatprep.subr.mxu0 0.0
    %v669 = vand.u32 %v644, 4294901760
    %670 = vmatpush1.msra.mxu0 %v669
    %671 = vmatprep.subr.mxu0 0.0
    %672 = vmatpush1.msra.mxu0 0.0
    %673 = vmatprep.subr.mxu0 0.0
    %674 = vmatpush1.msra.mxu0 0.0
    %675 = vmatprep.subr.mxu0 0.0
    %676 = vmatpush1.msra.mxu0 0.0
    %677 = vmatprep.subr.mxu0 0.0
    %678 = vmatpush1.msra.mxu0 0.0
    %679 = vmatprep.subr.mxu0 0.0
    %680 = vmatpush1.msra.mxu0 0.0
    %681 = vmatprep.subr.mxu0 0.0
    %682 = vmatpush1.msra.mxu0 0.0
    %683 = vmatprep.subr.mxu0 0.0
    %684 = vmatpush1.msra.mxu0 0.0
    %685 = vmatprep.subr.mxu0 0.0
    %686 = vmatpush1.msra.mxu0 0.0
    %687 = vmatprep.subr.mxu0 0.0
    %688 = vmatpush1.msra.mxu0 0.0
    %689 = vmatprep.subr.mxu0 0.0
    %690 = vmatpush1.msra.mxu0 0.0
    %691 = vmatprep.subr.mxu0 0.0
    %692 = vmatpush1.msra.mxu0 0.0
    %693 = vmatprep.subr.mxu0 0.0
    %694 = vmatpush1.msra.mxu0 0.0
    %695 = vmatprep.subr.mxu0 0.0
    %696 = vmatpush1.msra.mxu0 0.0
    %697 = vmatprep.subr.mxu0 0.0
    %698 = vmatpush1.msra.mxu0 0.0
    %699 = vmatprep.subr.mxu0 0.0
    %700 = vmatpush1.msra.mxu0 0.0
    %701 = vmatprep.subr.mxu0 0.0
    %702 = vmatpush1.msra.mxu0 0.0
    %703 = vmatprep.subr.mxu0 0.0
    %704 = vmatpush1.msra.mxu0 0.0
    %705 = vmatprep.subr.mxu0 0.0
    %706 = vmatpush1.msra.mxu0 0.0
    %707 = vmatprep.subr.mxu0 0.0
    %708 = vmatpush1.msra.mxu0 0.0
    %709 = vmatprep.subr.mxu0 0.0
    %710 = vmatpush1.msra.mxu0 0.0
    %711 = vmatprep.subr.mxu0 0.0
    %712 = vmatpush1.msra.mxu0 0.0
    %713 = vmatprep.subr.mxu0 0.0
    %714 = vmatpush1.msra.mxu0 0.0
    %715 = vmatprep.subr.mxu0 0.0
    %716 = vmatpush1.msra.mxu0 0.0
    %717 = vmatprep.subr.mxu0 0.0
    %718 = vmatpush1.msra.mxu0 0.0
    %719 = vmatprep.subr.mxu0 0.0
    %720 = vmatpush1.msra.mxu0 0.0
    %721 = vmatprep.subr.mxu0 0.0
    %722 = vmatpush1.msra.mxu0 0.0
    %723 = vmatprep.subr.mxu0 0.0
    %724 = vmatpush1.msra.mxu0 0.0
    %725 = vmatprep.subr.mxu0 0.0
    %726 = vmatpush1.msra.mxu0 0.0
    %727 = vmatprep.mubr.f32.mxu0 0.0
    %v728 = vand.u32 %v654, 4294901760
    %v729 = vsub.f32 %v654, %v728
    %v730 = vand.u32 %v729, 4294901760
    %v731 = vsub.f32 %v729, %v730
    %v732 = vand.u32 %v731, 4294901760
    %733 = vmatmul.mubr.f32.gmra.mrb[0].mxu0 %v732
    %v734 = vpop.f32.mrb[0].mxu0
    %v735 = vadd.f32 %v650, %v734
    %v736 = vpop.f32.mrb[0].mxu0
    %737 = vmatprep.mubr.f32.mxu0 0.0
    %v738 = vand.u32 %v657, 4294901760
    %v739 = vsub.f32 %v657, %v738
    %v740 = vand.u32 %v739, 4294901760
    %v741 = vsub.f32 %v739, %v740
    %v742 = vand.u32 %v741, 4294901760
    %743 = vmatmul.mubr.f32.gmra.mrb[0].mxu0 %v742
    %v744 = vpop.f32.mrb[0].mxu0
    %v745 = vadd.f32 %v650, %v744
    %v746 = vpop.f32.mrb[0].mxu0
    %747 = vdwg.mxu0
    %748 = vmatprep.subr.mxu0 0.0
    %v749 = vand.u32 %v641, 4294901760
    %v750 = vsub.f32 %v641, %v749
    %v751 = vand.u32 %v750, 4294901760
    %v752 = vsub.f32 %v750, %v751
    %v753 = vand.u32 %v752, 4294901760
    %754 = vmatpush1.msra.mxu0 %v753
    %755 = vmatprep.subr.mxu0 0.0
    %v756 = vand.u32 %v642, 4294901760
    %v757 = vsub.f32 %v642, %v756
    %v758 = vand.u32 %v757, 4294901760
    %v759 = vsub.f32 %v757, %v758
    %v760 = vand.u32 %v759, 4294901760
    %761 = vmatpush1.msra.mxu0 %v760
    %762 = vmatprep.subr.mxu0 0.0
    %v763 = vand.u32 %v643, 4294901760
    %v764 = vsub.f32 %v643, %v763
    %v765 = vand.u32 %v764, 4294901760
    %v766 = vsub.f32 %v764, %v765
    %v767 = vand.u32 %v766, 4294901760
    %768 = vmatpush1.msra.mxu0 %v767
    %769 = vmatprep.subr.mxu0 0.0
    %v770 = vand.u32 %v644, 4294901760
    %v771 = vsub.f32 %v644, %v770
    %v772 = vand.u32 %v771, 4294901760
    %v773 = vsub.f32 %v771, %v772
    %v774 = vand.u32 %v773, 4294901760
    %775 = vmatpush1.msra.mxu0 %v774
    %776 = vmatprep.subr.mxu0 0.0
    %777 = vmatpush1.msra.mxu0 0.0
    %778 = vmatprep.subr.mxu0 0.0
    %779 = vmatpush1.msra.mxu0 0.0
    %780 = vmatprep.subr.mxu0 0.0
    %781 = vmatpush1.msra.mxu0 0.0
    %782 = vmatprep.subr.mxu0 0.0
    %783 = vmatpush1.msra.mxu0 0.0
    %784 = vmatprep.subr.mxu0 0.0
    %785 = vmatpush1.msra.mxu0 0.0
    %786 = vmatprep.subr.mxu0 0.0
    %787 = vmatpush1.msra.mxu0 0.0
    %788 = vmatprep.subr.mxu0 0.0
    %789 = vmatpush1.msra.mxu0 0.0
    %790 = vmatprep.subr.mxu0 0.0
    %791 = vmatpush1.msra.mxu0 0.0
    %792 = vmatprep.subr.mxu0 0.0
    %793 = vmatpush1.msra.mxu0 0.0
    %794 = vmatprep.subr.mxu0 0.0
    %795 = vmatpush1.msra.mxu0 0.0
    %796 = vmatprep.subr.mxu0 0.0
    %797 = vmatpush1.msra.mxu0 0.0
    %798 = vmatprep.subr.mxu0 0.0
    %799 = vmatpush1.msra.mxu0 0.0
    %800 = vmatprep.subr.mxu0 0.0
    %801 = vmatpush1.msra.mxu0 0.0
    %802 = vmatprep.subr.mxu0 0.0
    %803 = vmatpush1.msra.mxu0 0.0
    %804 = vmatprep.subr.mxu0 0.0
    %805 = vmatpush1.msra.mxu0 0.0
    %806 = vmatprep.subr.mxu0 0.0
    %807 = vmatpush1.msra.mxu0 0.0
    %808 = vmatprep.subr.mxu0 0.0
    %809 = vmatpush1.msra.mxu0 0.0
    %810 = vmatprep.subr.mxu0 0.0
    %811 = vmatpush1.msra.mxu0 0.0
    %812 = vmatprep.subr.mxu0 0.0
    %813 = vmatpush1.msra.mxu0 0.0
    %814 = vmatprep.subr.mxu0 0.0
    %815 = vmatpush1.msra.mxu0 0.0
    %816 = vmatprep.subr.mxu0 0.0
    %817 = vmatpush1.msra.mxu0 0.0
    %818 = vmatprep.subr.mxu0 0.0
    %819 = vmatpush1.msra.mxu0 0.0
    %820 = vmatprep.subr.mxu0 0.0
    %821 = vmatpush1.msra.mxu0 0.0
    %822 = vmatprep.subr.mxu0 0.0
    %823 = vmatpush1.msra.mxu0 0.0
    %824 = vmatprep.subr.mxu0 0.0
    %825 = vmatpush1.msra.mxu0 0.0
    %826 = vmatprep.subr.mxu0 0.0
    %827 = vmatpush1.msra.mxu0 0.0
    %828 = vmatprep.subr.mxu0 0.0
    %829 = vmatpush1.msra.mxu0 0.0
    %830 = vmatprep.subr.mxu0 0.0
    %831 = vmatpush1.msra.mxu0 0.0
    %832 = vmatprep.mubr.f32.mxu0 0.0
    %v833 = vand.u32 %v654, 4294901760
    %834 = vmatmul.mubr.f32.gmra.mrb[0].mxu0 %v833
    %v835 = vpop.f32.mrb[0].mxu0
    %v836 = vadd.f32 %v735, %v835
    %v837 = vpop.f32.mrb[0].mxu0
    %838 = vmatprep.mubr.f32.mxu0 0.0
    %v839 = vand.u32 %v657, 4294901760
    %840 = vmatmul.mubr.f32.gmra.mrb[0].mxu0 %v839
    %v841 = vpop.f32.mrb[0].mxu0
    %v842 = vadd.f32 %v745, %v841
    %v843 = vpop.f32.mrb[0].mxu0
    %844 = vdwg.mxu0
    %845 = vmatprep.subr.mxu0 0.0
    %v846 = vand.u32 %v641, 4294901760
    %v847 = vsub.f32 %v641, %v846
    %848 = vmatpush1.msra.mxu0 %v847
    %849 = vmatprep.subr.mxu0 0.0
    %v850 = vand.u32 %v642, 4294901760
    %v851 = vsub.f32 %v642, %v850
    %852 = vmatpush1.msra.mxu0 %v851
    %853 = vmatprep.subr.mxu0 0.0
    %v854 = vand.u32 %v643, 4294901760
    %v855 = vsub.f32 %v643, %v854
    %856 = vmatpush1.msra.mxu0 %v855
    %857 = vmatprep.subr.mxu0 0.0
    %v858 = vand.u32 %v644, 4294901760
    %v859 = vsub.f32 %v644, %v858
    %860 = vmatpush1.msra.mxu0 %v859
    %861 = vmatprep.subr.mxu0 0.0
    %862 = vmatpush1.msra.mxu0 0.0
    %863 = vmatprep.subr.mxu0 0.0
    %864 = vmatpush1.msra.mxu0 0.0
    %865 = vmatprep.subr.mxu0 0.0
    %866 = vmatpush1.msra.mxu0 0.0
    %867 = vmatprep.subr.mxu0 0.0
    %868 = vmatpush1.msra.mxu0 0.0
    %869 = vmatprep.subr.mxu0 0.0
    %870 = vmatpush1.msra.mxu0 0.0
    %871 = vmatprep.subr.mxu0 0.0
    %872 = vmatpush1.msra.mxu0 0.0
    %873 = vmatprep.subr.mxu0 0.0
    %874 = vmatpush1.msra.mxu0 0.0
    %875 = vmatprep.subr.mxu0 0.0
    %876 = vmatpush1.msra.mxu0 0.0
    %877 = vmatprep.subr.mxu0 0.0
    %878 = vmatpush1.msra.mxu0 0.0
    %879 = vmatprep.subr.mxu0 0.0
    %880 = vmatpush1.msra.mxu0 0.0
    %881 = vmatprep.subr.mxu0 0.0
    %882 = vmatpush1.msra.mxu0 0.0
    %883 = vmatprep.subr.mxu0 0.0
    %884 = vmatpush1.msra.mxu0 0.0
    %885 = vmatprep.subr.mxu0 0.0
    %886 = vmatpush1.msra.mxu0 0.0
    %887 = vmatprep.subr.mxu0 0.0
    %888 = vmatpush1.msra.mxu0 0.0
    %889 = vmatprep.subr.mxu0 0.0
    %890 = vmatpush1.msra.mxu0 0.0
    %891 = vmatprep.subr.mxu0 0.0
    %892 = vmatpush1.msra.mxu0 0.0
    %893 = vmatprep.subr.mxu0 0.0
    %894 = vmatpush1.msra.mxu0 0.0
    %895 = vmatprep.subr.mxu0 0.0
    %896 = vmatpush1.msra.mxu0 0.0
    %897 = vmatprep.subr.mxu0 0.0
    %898 = vmatpush1.msra.mxu0 0.0
    %899 = vmatprep.subr.mxu0 0.0
    %900 = vmatpush1.msra.mxu0 0.0
    %901 = vmatprep.subr.mxu0 0.0
    %902 = vmatpush1.msra.mxu0 0.0
    %903 = vmatprep.subr.mxu0 0.0
    %904 = vmatpush1.msra.mxu0 0.0
    %905 = vmatprep.subr.mxu0 0.0
    %906 = vmatpush1.msra.mxu0 0.0
    %907 = vmatprep.subr.mxu0 0.0
    %908 = vmatpush1.msra.mxu0 0.0
    %909 = vmatprep.subr.mxu0 0.0
    %910 = vmatpush1.msra.mxu0 0.0
    %911 = vmatprep.subr.mxu0 0.0
    %912 = vmatpush1.msra.mxu0 0.0
    %913 = vmatprep.subr.mxu0 0.0
    %914 = vmatpush1.msra.mxu0 0.0
    %915 = vmatprep.subr.mxu0 0.0
    %916 = vmatpush1.msra.mxu0 0.0
    %917 = vmatprep.mubr.f32.mxu0 0.0
    %v918 = vand.u32 %v654, 4294901760
    %v919 = vsub.f32 %v654, %v918
    %920 = vmatmul.mubr.f32.gmra.mrb[0].mxu0 %v919
    %v921 = vpop.f32.mrb[0].mxu0
    %v922 = vadd.f32 %v836, %v921
    %v923 = vpop.f32.mrb[0].mxu0
    %924 = vmatprep.mubr.f32.mxu0 0.0
    %v925 = vand.u32 %v657, 4294901760
    %v926 = vsub.f32 %v657, %v925
    %927 = vmatmul.mubr.f32.gmra.mrb[0].mxu0 %v926
    %v928 = vpop.f32.mrb[0].mxu0
    %v929 = vadd.f32 %v842, %v928
    %v930 = vpop.f32.mrb[0].mxu0
    %931 = vdwg.mxu0
    %932 = vmatprep.subr.mxu0 0.0
    %v933 = vand.u32 %v641, 4294901760
    %934 = vmatpush1.msra.mxu0 %v933
    %935 = vmatprep.subr.mxu0 0.0
    %v936 = vand.u32 %v642, 4294901760
    %937 = vmatpush1.msra.mxu0 %v936
    %938 = vmatprep.subr.mxu0 0.0
    %v939 = vand.u32 %v643, 4294901760
    %940 = vmatpush1.msra.mxu0 %v939
    %941 = vmatprep.subr.mxu0 0.0
    %v942 = vand.u32 %v644, 4294901760
    %943 = vmatpush1.msra.mxu0 %v942
    %944 = vmatprep.subr.mxu0 0.0
    %945 = vmatpush1.msra.mxu0 0.0
    %946 = vmatprep.subr.mxu0 0.0
    %947 = vmatpush1.msra.mxu0 0.0
    %948 = vmatprep.subr.mxu0 0.0
    %949 = vmatpush1.msra.mxu0 0.0
    %950 = vmatprep.subr.mxu0 0.0
    %951 = vmatpush1.msra.mxu0 0.0
    %952 = vmatprep.subr.mxu0 0.0
    %953 = vmatpush1.msra.mxu0 0.0
    %954 = vmatprep.subr.mxu0 0.0
    %955 = vmatpush1.msra.mxu0 0.0
    %956 = vmatprep.subr.mxu0 0.0
    %957 = vmatpush1.msra.mxu0 0.0
    %958 = vmatprep.subr.mxu0 0.0
    %959 = vmatpush1.msra.mxu0 0.0
    %960 = vmatprep.subr.mxu0 0.0
    %961 = vmatpush1.msra.mxu0 0.0
    %962 = vmatprep.subr.mxu0 0.0
    %963 = vmatpush1.msra.mxu0 0.0
    %964 = vmatprep.subr.mxu0 0.0
    %965 = vmatpush1.msra.mxu0 0.0
    %966 = vmatprep.subr.mxu0 0.0
    %967 = vmatpush1.msra.mxu0 0.0
    %968 = vmatprep.subr.mxu0 0.0
    %969 = vmatpush1.msra.mxu0 0.0
    %970 = vmatprep.subr.mxu0 0.0
    %971 = vmatpush1.msra.mxu0 0.0
    %972 = vmatprep.subr.mxu0 0.0
    %973 = vmatpush1.msra.mxu0 0.0
    %974 = vmatprep.subr.mxu0 0.0
    %975 = vmatpush1.msra.mxu0 0.0
    %976 = vmatprep.subr.mxu0 0.0
    %977 = vmatpush1.msra.mxu0 0.0
    %978 = vmatprep.subr.mxu0 0.0
    %979 = vmatpush1.msra.mxu0 0.0
    %980 = vmatprep.subr.mxu0 0.0
    %981 = vmatpush1.msra.mxu0 0.0
    %982 = vmatprep.subr.mxu0 0.0
    %983 = vmatpush1.msra.mxu0 0.0
    %984 = vmatprep.subr.mxu0 0.0
    %985 = vmatpush1.msra.mxu0 0.0
    %986 = vmatprep.subr.mxu0 0.0
    %987 = vmatpush1.msra.mxu0 0.0
    %988 = vmatprep.subr.mxu0 0.0
    %989 = vmatpush1.msra.mxu0 0.0
    %990 = vmatprep.subr.mxu0 0.0
    %991 = vmatpush1.msra.mxu0 0.0
    %992 = vmatprep.subr.mxu0 0.0
    %993 = vmatpush1.msra.mxu0 0.0
    %994 = vmatprep.subr.mxu0 0.0
    %995 = vmatpush1.msra.mxu0 0.0
    %996 = vmatprep.subr.mxu0 0.0
    %997 = vmatpush1.msra.mxu0 0.0
    %998 = vmatprep.subr.mxu0 0.0
    %999 = vmatpush1.msra.mxu0 0.0
    %1000 = vmatprep.mubr.f32.mxu0 0.0
    %v1001 = vand.u32 %v654, 4294901760
    %v1002 = vsub.f32 %v654, %v1001
    %v1003 = vand.u32 %v1002, 4294901760
    %1004 = vmatmul.mubr.f32.gmra.mrb[0].mxu0 %v1003
    %v1005 = vpop.f32.mrb[0].mxu0
    %v1006 = vadd.f32 %v922, %v1005
    %v1007 = vpop.f32.mrb[0].mxu0
    %1008 = vmatprep.mubr.f32.mxu0 0.0
    %v1009 = vand.u32 %v657, 4294901760
    %v1010 = vsub.f32 %v657, %v1009
    %v1011 = vand.u32 %v1010, 4294901760
    %1012 = vmatmul.mubr.f32.gmra.mrb[0].mxu0 %v1011
    %v1013 = vpop.f32.mrb[0].mxu0
    %v1014 = vadd.f32 %v929, %v1013
    %v1015 = vpop.f32.mrb[0].mxu0
    %1016 = vdwg.mxu0
    %1017 = vmatprep.subr.mxu0 0.0
    %v1018 = vand.u32 %v641, 4294901760
    %v1019 = vsub.f32 %v641, %v1018
    %v1020 = vand.u32 %v1019, 4294901760
    %1021 = vmatpush1.msra.mxu0 %v1020
    %1022 = vmatprep.subr.mxu0 0.0
    %v1023 = vand.u32 %v642, 4294901760
    %v1024 = vsub.f32 %v642, %v1023
    %v1025 = vand.u32 %v1024, 4294901760
    %1026 = vmatpush1.msra.mxu0 %v1025
    %1027 = vmatprep.subr.mxu0 0.0
    %v1028 = vand.u32 %v643, 4294901760
    %v1029 = vsub.f32 %v643, %v1028
    %v1030 = vand.u32 %v1029, 4294901760
    %1031 = vmatpush1.msra.mxu0 %v1030
    %1032 = vmatprep.subr.mxu0 0.0
    %v1033 = vand.u32 %v644, 4294901760
    %v1034 = vsub.f32 %v644, %v1033
    %v1035 = vand.u32 %v1034, 4294901760
    %1036 = vmatpush1.msra.mxu0 %v1035
    %1037 = vmatprep.subr.mxu0 0.0
    %1038 = vmatpush1.msra.mxu0 0.0
    %1039 = vmatprep.subr.mxu0 0.0
    %1040 = vmatpush1.msra.mxu0 0.0
    %1041 = vmatprep.subr.mxu0 0.0
    %1042 = vmatpush1.msra.mxu0 0.0
    %1043 = vmatprep.subr.mxu0 0.0
    %1044 = vmatpush1.msra.mxu0 0.0
    %1045 = vmatprep.subr.mxu0 0.0
    %1046 = vmatpush1.msra.mxu0 0.0
    %1047 = vmatprep.subr.mxu0 0.0
    %1048 = vmatpush1.msra.mxu0 0.0
    %1049 = vmatprep.subr.mxu0 0.0
    %1050 = vmatpush1.msra.mxu0 0.0
    %1051 = vmatprep.subr.mxu0 0.0
    %1052 = vmatpush1.msra.mxu0 0.0
    %1053 = vmatprep.subr.mxu0 0.0
    %1054 = vmatpush1.msra.mxu0 0.0
    %1055 = vmatprep.subr.mxu0 0.0
    %1056 = vmatpush1.msra.mxu0 0.0
    %1057 = vmatprep.subr.mxu0 0.0
    %1058 = vmatpush1.msra.mxu0 0.0
    %1059 = vmatprep.subr.mxu0 0.0
    %1060 = vmatpush1.msra.mxu0 0.0
    %1061 = vmatprep.subr.mxu0 0.0
    %1062 = vmatpush1.msra.mxu0 0.0
    %1063 = vmatprep.subr.mxu0 0.0
    %1064 = vmatpush1.msra.mxu0 0.0
    %1065 = vmatprep.subr.mxu0 0.0
    %1066 = vmatpush1.msra.mxu0 0.0
    %1067 = vmatprep.subr.mxu0 0.0
    %1068 = vmatpush1.msra.mxu0 0.0
    %1069 = vmatprep.subr.mxu0 0.0
    %1070 = vmatpush1.msra.mxu0 0.0
    %1071 = vmatprep.subr.mxu0 0.0
    %1072 = vmatpush1.msra.mxu0 0.0
    %1073 = vmatprep.subr.mxu0 0.0
    %1074 = vmatpush1.msra.mxu0 0.0
    %1075 = vmatprep.subr.mxu0 0.0
    %1076 = vmatpush1.msra.mxu0 0.0
    %1077 = vmatprep.subr.mxu0 0.0
    %1078 = vmatpush1.msra.mxu0 0.0
    %1079 = vmatprep.subr.mxu0 0.0
    %1080 = vmatpush1.msra.mxu0 0.0
    %1081 = vmatprep.subr.mxu0 0.0
    %1082 = vmatpush1.msra.mxu0 0.0
    %1083 = vmatprep.subr.mxu0 0.0
    %1084 = vmatpush1.msra.mxu0 0.0
    %1085 = vmatprep.subr.mxu0 0.0
    %1086 = vmatpush1.msra.mxu0 0.0
    %1087 = vmatprep.subr.mxu0 0.0
    %1088 = vmatpush1.msra.mxu0 0.0
    %1089 = vmatprep.subr.mxu0 0.0
    %1090 = vmatpush1.msra.mxu0 0.0
    %1091 = vmatprep.subr.mxu0 0.0
    %1092 = vmatpush1.msra.mxu0 0.0
    %1093 = vmatprep.mubr.f32.mxu0 0.0
    %v1094 = vand.u32 %v654, 4294901760
    %1095 = vmatmul.mubr.f32.gmra.mrb[0].mxu0 %v1094
    %v1096 = vpop.f32.mrb[0].mxu0
    %v1097 = vadd.f32 %v1006, %v1096
    %v1098 = vpop.f32.mrb[0].mxu0
    %1099 = vmatprep.mubr.f32.mxu0 0.0
    %v1100 = vand.u32 %v657, 4294901760
    %1101 = vmatmul.mubr.f32.gmra.mrb[0].mxu0 %v1100
    %v1102 = vpop.f32.mrb[0].mxu0
    %v1103 = vadd.f32 %v1014, %v1102
    %v1104 = vpop.f32.mrb[0].mxu0
    %1105 = vdwg.mxu0
    %1106 = vmatprep.subr.mxu0 0.0
    %v1107 = vand.u32 %v641, 4294901760
    %1108 = vmatpush1.msra.mxu0 %v1107
    %1109 = vmatprep.subr.mxu0 0.0
    %v1110 = vand.u32 %v642, 4294901760
    %1111 = vmatpush1.msra.mxu0 %v1110
    %1112 = vmatprep.subr.mxu0 0.0
    %v1113 = vand.u32 %v643, 4294901760
    %1114 = vmatpush1.msra.mxu0 %v1113
    %1115 = vmatprep.subr.mxu0 0.0
    %v1116 = vand.u32 %v644, 4294901760
    %1117 = vmatpush1.msra.mxu0 %v1116
    %1118 = vmatprep.subr.mxu0 0.0
    %1119 = vmatpush1.msra.mxu0 0.0
    %1120 = vmatprep.subr.mxu0 0.0
    %1121 = vmatpush1.msra.mxu0 0.0
    %1122 = vmatprep.subr.mxu0 0.0
    %1123 = vmatpush1.msra.mxu0 0.0
    %1124 = vmatprep.subr.mxu0 0.0
    %1125 = vmatpush1.msra.mxu0 0.0
    %1126 = vmatprep.subr.mxu0 0.0
    %1127 = vmatpush1.msra.mxu0 0.0
    %1128 = vmatprep.subr.mxu0 0.0
    %1129 = vmatpush1.msra.mxu0 0.0
    %1130 = vmatprep.subr.mxu0 0.0
    %1131 = vmatpush1.msra.mxu0 0.0
    %1132 = vmatprep.subr.mxu0 0.0
    %1133 = vmatpush1.msra.mxu0 0.0
    %1134 = vmatprep.subr.mxu0 0.0
    %1135 = vmatpush1.msra.mxu0 0.0
    %1136 = vmatprep.subr.mxu0 0.0
    %1137 = vmatpush1.msra.mxu0 0.0
    %1138 = vmatprep.subr.mxu0 0.0
    %1139 = vmatpush1.msra.mxu0 0.0
    %1140 = vmatprep.subr.mxu0 0.0
    %1141 = vmatpush1.msra.mxu0 0.0
    %1142 = vmatprep.subr.mxu0 0.0
    %1143 = vmatpush1.msra.mxu0 0.0
    %1144 = vmatprep.subr.mxu0 0.0
    %1145 = vmatpush1.msra.mxu0 0.0
    %1146 = vmatprep.subr.mxu0 0.0
    %1147 = vmatpush1.msra.mxu0 0.0
    %1148 = vmatprep.subr.mxu0 0.0
    %1149 = vmatpush1.msra.mxu0 0.0
    %1150 = vmatprep.subr.mxu0 0.0
    %1151 = vmatpush1.msra.mxu0 0.0
    %1152 = vmatprep.subr.mxu0 0.0
    %1153 = vmatpush1.msra.mxu0 0.0
    %1154 = vmatprep.subr.mxu0 0.0
    %1155 = vmatpush1.msra.mxu0 0.0
    %1156 = vmatprep.subr.mxu0 0.0
    %1157 = vmatpush1.msra.mxu0 0.0
    %1158 = vmatprep.subr.mxu0 0.0
    %1159 = vmatpush1.msra.mxu0 0.0
    %1160 = vmatprep.subr.mxu0 0.0
    %1161 = vmatpush1.msra.mxu0 0.0
    %1162 = vmatprep.subr.mxu0 0.0
    %1163 = vmatpush1.msra.mxu0 0.0
    %1164 = vmatprep.subr.mxu0 0.0
    %1165 = vmatpush1.msra.mxu0 0.0
    %1166 = vmatprep.subr.mxu0 0.0
    %1167 = vmatpush1.msra.mxu0 0.0
    %1168 = vmatprep.subr.mxu0 0.0
    %1169 = vmatpush1.msra.mxu0 0.0
    %1170 = vmatprep.subr.mxu0 0.0
    %1171 = vmatpush1.msra.mxu0 0.0
    %1172 = vmatprep.subr.mxu0 0.0
    %1173 = vmatpush1.msra.mxu0 0.0
    %1174 = vmatprep.mubr.f32.mxu0 0.0
    %v1175 = vand.u32 %v654, 4294901760
    %1176 = vmatmul.mubr.f32.gmra.mrb[0].mxu0 %v1175
    %v1177 = vpop.f32.mrb[0].mxu0
    %v1178 = vadd.f32 %v1097, %v1177
    %v1179 = vpop.f32.mrb[0].mxu0
    %1180 = vmatprep.mubr.f32.mxu0 0.0
    %v1181 = vand.u32 %v657, 4294901760
    %1182 = vmatmul.mubr.f32.gmra.mrb[0].mxu0 %v1181
    %v1183 = vpop.f32.mrb[0].mxu0
    %v1184 = vadd.f32 %v1103, %v1183
    %v1185 = vpop.f32.mrb[0].mxu0
    %1186 = vdwg.mxu0
    %v1187 = vmul.f32 %v1178, 0.5
    %v1188 = vmul.f32 %v1184, 0.5
    %v1189 = vmul.f32 %v1178, 0.70710677
    %v1190 = vmul.f32 %v1184, 0.70710677
    %v1191 = verf.f32.pop %v1189
    %v1192 = verf.f32.pop %v1190
    %v1193 = vadd.f32 %v1191, 1.0
    %v1194 = vadd.f32 %v1192, 1.0
    %v1195 = vmul.f32 %v1187, %v1193
    %v1196 = vmul.f32 %v1188, %v1194
    %v1197 = vld [vmem:[#allocation2] sm:$0xff]
    %v1198 = vld [vmem:[#allocation2 + $0x8] sm:$0xff]
    %v1199 = vld [vmem:[%s7] sm:$0xff]
    %v1200 = vld [vmem:[%s7 + $0x8] sm:$0xff]
    %v1201 = vld [vmem:[%s7 + $0x10] sm:$0xff]
    %v1202 = vld [vmem:[%s7 + $0x18] sm:$0xff]
    %v1203 = vld [vmem:[%s7 + $0x20] sm:$0xff]
    %v1204 = vld [vmem:[%s7 + $0x28] sm:$0xff]
    %v1205 = vld [vmem:[%s7 + $0x30] sm:$0xff]
    %v1206 = vld [vmem:[%s7 + $0x38] sm:$0xff]
    %vm1207 = vcmask 523264
    %v1209 = vsel %vm1207, %v1195, 0
    %v1212 = vsel %vm1207, %v1196, 0
    %1214 = vmatprep.subr.mxu0 0.0
    %v1215 = vand.u32 %v1199, 4294901760
    %1216 = vmatpush1.msra.mxu0 %v1215
    %1217 = vmatprep.subr.mxu0 0.0
    %v1218 = vand.u32 %v1200, 4294901760
    %1219 = vmatpush1.msra.mxu0 %v1218
    %1220 = vmatprep.subr.mxu0 0.0
    %v1221 = vand.u32 %v1201, 4294901760
    %1222 = vmatpush1.msra.mxu0 %v1221
    %1223 = vmatprep.subr.mxu0 0.0
    %v1224 = vand.u32 %v1202, 4294901760
    %1225 = vmatpush1.msra.mxu0 %v1224
    %1226 = vmatprep.subr.mxu0 0.0
    %v1227 = vand.u32 %v1203, 4294901760
    %1228 = vmatpush1.msra.mxu0 %v1227
    %1229 = vmatprep.subr.mxu0 0.0
    %v1230 = vand.u32 %v1204, 4294901760
    %1231 = vmatpush1.msra.mxu0 %v1230
    %1232 = vmatprep.subr.mxu0 0.0
    %v1233 = vand.u32 %v1205, 4294901760
    %1234 = vmatpush1.msra.mxu0 %v1233
    %1235 = vmatprep.subr.mxu0 0.0
    %v1236 = vand.u32 %v1206, 4294901760
    %1237 = vmatpush1.msra.mxu0 %v1236
    %1238 = vmatprep.subr.mxu0 0.0
    %1239 = vmatpush1.msra.mxu0 0.0
    %1240 = vmatprep.subr.mxu0 0.0
    %1241 = vmatpush1.msra.mxu0 0.0
    %1242 = vmatprep.subr.mxu0 0.0
    %1243 = vmatpush1.msra.mxu0 0.0
    %1244 = vmatprep.subr.mxu0 0.0
    %1245 = vmatpush1.msra.mxu0 0.0
    %1246 = vmatprep.subr.mxu0 0.0
    %1247 = vmatpush1.msra.mxu0 0.0
    %1248 = vmatprep.subr.mxu0 0.0
    %1249 = vmatpush1.msra.mxu0 0.0
    %1250 = vmatprep.subr.mxu0 0.0
    %1251 = vmatpush1.msra.mxu0 0.0
    %1252 = vmatprep.subr.mxu0 0.0
    %1253 = vmatpush1.msra.mxu0 0.0
    %1254 = vmatprep.subr.mxu0 0.0
    %1255 = vmatpush1.msra.mxu0 0.0
    %1256 = vmatprep.subr.mxu0 0.0
    %1257 = vmatpush1.msra.mxu0 0.0
    %1258 = vmatprep.subr.mxu0 0.0
    %1259 = vmatpush1.msra.mxu0 0.0
    %1260 = vmatprep.subr.mxu0 0.0
    %1261 = vmatpush1.msra.mxu0 0.0
    %1262 = vmatprep.subr.mxu0 0.0
    %1263 = vmatpush1.msra.mxu0 0.0
    %1264 = vmatprep.subr.mxu0 0.0
    %1265 = vmatpush1.msra.mxu0 0.0
    %1266 = vmatprep.subr.mxu0 0.0
    %1267 = vmatpush1.msra.mxu0 0.0
    %1268 = vmatprep.subr.mxu0 0.0
    %1269 = vmatpush1.msra.mxu0 0.0
    %1270 = vmatprep.subr.mxu0 0.0
    %1271 = vmatpush1.msra.mxu0 0.0
    %1272 = vmatprep.subr.mxu0 0.0
    %1273 = vmatpush1.msra.mxu0 0.0
    %1274 = vmatprep.subr.mxu0 0.0
    %1275 = vmatpush1.msra.mxu0 0.0
    %1276 = vmatprep.subr.mxu0 0.0
    %1277 = vmatpush1.msra.mxu0 0.0
    %1278 = vmatprep.subr.mxu0 0.0
    %1279 = vmatpush1.msra.mxu0 0.0
    %1280 = vmatprep.subr.mxu0 0.0
    %1281 = vmatpush1.msra.mxu0 0.0
    %1282 = vmatprep.subr.mxu0 0.0
    %1283 = vmatpush1.msra.mxu0 0.0
    %1284 = vmatprep.subr.mxu0 0.0
    %1285 = vmatpush1.msra.mxu0 0.0
    %1286 = vmatprep.mubr.f32.mxu0 0.0
    %v1287 = vand.u32 %v1209, 4294901760
    %v1288 = vsub.f32 %v1209, %v1287
    %v1289 = vand.u32 %v1288, 4294901760
    %v1290 = vsub.f32 %v1288, %v1289
    %v1291 = vand.u32 %v1290, 4294901760
    %1292 = vmatmul.mubr.f32.gmra.mrb[0].mxu0 %v1291
    %v1293 = vpop.f32.mrb[0].mxu0
    %v1294 = vadd.f32 0.0, %v1293
    %v1295 = vpop.f32.mrb[0].mxu0
    %1296 = vmatprep.mubr.f32.mxu0 0.0
    %v1297 = vand.u32 %v1212, 4294901760
    %v1298 = vsub.f32 %v1212, %v1297
    %v1299 = vand.u32 %v1298, 4294901760
    %v1300 = vsub.f32 %v1298, %v1299
    %v1301 = vand.u32 %v1300, 4294901760
    %1302 = vmatmul.mubr.f32.gmra.mrb[0].mxu0 %v1301
    %v1303 = vpop.f32.mrb[0].mxu0
    %v1304 = vadd.f32 0.0, %v1303
    %v1305 = vpop.f32.mrb[0].mxu0
    %1306 = vdwg.mxu0
    %1307 = vmatprep.subr.mxu0 0.0
    %v1308 = vand.u32 %v1199, 4294901760
    %v1309 = vsub.f32 %v1199, %v1308
    %v1310 = vand.u32 %v1309, 4294901760
    %v1311 = vsub.f32 %v1309, %v1310
    %v1312 = vand.u32 %v1311, 4294901760
    %1313 = vmatpush1.msra.mxu0 %v1312
    %1314 = vmatprep.subr.mxu0 0.0
    %v1315 = vand.u32 %v1200, 4294901760
    %v1316 = vsub.f32 %v1200, %v1315
    %v1317 = vand.u32 %v1316, 4294901760
    %v1318 = vsub.f32 %v1316, %v1317
    %v1319 = vand.u32 %v1318, 4294901760
    %1320 = vmatpush1.msra.mxu0 %v1319
    %1321 = vmatprep.subr.mxu0 0.0
    %v1322 = vand.u32 %v1201, 4294901760
    %v1323 = vsub.f32 %v1201, %v1322
    %v1324 = vand.u32 %v1323, 4294901760
    %v1325 = vsub.f32 %v1323, %v1324
    %v1326 = vand.u32 %v1325, 4294901760
    %1327 = vmatpush1.msra.mxu0 %v1326
    %1328 = vmatprep.subr.mxu0 0.0
    %v1329 = vand.u32 %v1202, 4294901760
    %v1330 = vsub.f32 %v1202, %v1329
    %v1331 = vand.u32 %v1330, 4294901760
    %v1332 = vsub.f32 %v1330, %v1331
    %v1333 = vand.u32 %v1332, 4294901760
    %1334 = vmatpush1.msra.mxu0 %v1333
    %1335 = vmatprep.subr.mxu0 0.0
    %v1336 = vand.u32 %v1203, 4294901760
    %v1337 = vsub.f32 %v1203, %v1336
    %v1338 = vand.u32 %v1337, 4294901760
    %v1339 = vsub.f32 %v1337, %v1338
    %v1340 = vand.u32 %v1339, 4294901760
    %1341 = vmatpush1.msra.mxu0 %v1340
    %1342 = vmatprep.subr.mxu0 0.0
    %v1343 = vand.u32 %v1204, 4294901760
    %v1344 = vsub.f32 %v1204, %v1343
    %v1345 = vand.u32 %v1344, 4294901760
    %v1346 = vsub.f32 %v1344, %v1345
    %v1347 = vand.u32 %v1346, 4294901760
    %1348 = vmatpush1.msra.mxu0 %v1347
    %1349 = vmatprep.subr.mxu0 0.0
    %v1350 = vand.u32 %v1205, 4294901760
    %v1351 = vsub.f32 %v1205, %v1350
    %v1352 = vand.u32 %v1351, 4294901760
    %v1353 = vsub.f32 %v1351, %v1352
    %v1354 = vand.u32 %v1353, 4294901760
    %1355 = vmatpush1.msra.mxu0 %v1354
    %1356 = vmatprep.subr.mxu0 0.0
    %v1357 = vand.u32 %v1206, 4294901760
    %v1358 = vsub.f32 %v1206, %v1357
    %v1359 = vand.u32 %v1358, 4294901760
    %v1360 = vsub.f32 %v1358, %v1359
    %v1361 = vand.u32 %v1360, 4294901760
    %1362 = vmatpush1.msra.mxu0 %v1361
    %1363 = vmatprep.subr.mxu0 0.0
    %1364 = vmatpush1.msra.mxu0 0.0
    %1365 = vmatprep.subr.mxu0 0.0
    %1366 = vmatpush1.msra.mxu0 0.0
    %1367 = vmatprep.subr.mxu0 0.0
    %1368 = vmatpush1.msra.mxu0 0.0
    %1369 = vmatprep.subr.mxu0 0.0
    %1370 = vmatpush1.msra.mxu0 0.0
    %1371 = vmatprep.subr.mxu0 0.0
    %1372 = vmatpush1.msra.mxu0 0.0
    %1373 = vmatprep.subr.mxu0 0.0
    %1374 = vmatpush1.msra.mxu0 0.0
    %1375 = vmatprep.subr.mxu0 0.0
    %1376 = vmatpush1.msra.mxu0 0.0
    %1377 = vmatprep.subr.mxu0 0.0
    %1378 = vmatpush1.msra.mxu0 0.0
    %1379 = vmatprep.subr.mxu0 0.0
    %1380 = vmatpush1.msra.mxu0 0.0
    %1381 = vmatprep.subr.mxu0 0.0
    %1382 = vmatpush1.msra.mxu0 0.0
    %1383 = vmatprep.subr.mxu0 0.0
    %1384 = vmatpush1.msra.mxu0 0.0
    %1385 = vmatprep.subr.mxu0 0.0
    %1386 = vmatpush1.msra.mxu0 0.0
    %1387 = vmatprep.subr.mxu0 0.0
    %1388 = vmatpush1.msra.mxu0 0.0
    %1389 = vmatprep.subr.mxu0 0.0
    %1390 = vmatpush1.msra.mxu0 0.0
    %1391 = vmatprep.subr.mxu0 0.0
    %1392 = vmatpush1.msra.mxu0 0.0
    %1393 = vmatprep.subr.mxu0 0.0
    %1394 = vmatpush1.msra.mxu0 0.0
    %1395 = vmatprep.subr.mxu0 0.0
    %1396 = vmatpush1.msra.mxu0 0.0
    %1397 = vmatprep.subr.mxu0 0.0
    %1398 = vmatpush1.msra.mxu0 0.0
    %1399 = vmatprep.subr.mxu0 0.0
    %1400 = vmatpush1.msra.mxu0 0.0
    %1401 = vmatprep.subr.mxu0 0.0
    %1402 = vmatpush1.msra.mxu0 0.0
    %1403 = vmatprep.subr.mxu0 0.0
    %1404 = vmatpush1.msra.mxu0 0.0
    %1405 = vmatprep.subr.mxu0 0.0
    %1406 = vmatpush1.msra.mxu0 0.0
    %1407 = vmatprep.subr.mxu0 0.0
    %1408 = vmatpush1.msra.mxu0 0.0
    %1409 = vmatprep.subr.mxu0 0.0
    %1410 = vmatpush1.msra.mxu0 0.0
    %1411 = vmatprep.mubr.f32.mxu0 0.0
    %v1412 = vand.u32 %v1209, 4294901760
    %1413 = vmatmul.mubr.f32.gmra.mrb[0].mxu0 %v1412
    %v1414 = vpop.f32.mrb[0].mxu0
    %v1415 = vadd.f32 %v1294, %v1414
    %v1416 = vpop.f32.mrb[0].mxu0
    %1417 = vmatprep.mubr.f32.mxu0 0.0
    %v1418 = vand.u32 %v1212, 4294901760
    %1419 = vmatmul.mubr.f32.gmra.mrb[0].mxu0 %v1418
    %v1420 = vpop.f32.mrb[0].mxu0
    %v1421 = vadd.f32 %v1304, %v1420
    %v1422 = vpop.f32.mrb[0].mxu0
    %1423 = vdwg.mxu0
    %1424 = vmatprep.subr.mxu0 0.0
    %v1425 = vand.u32 %v1199, 4294901760
    %v1426 = vsub.f32 %v1199, %v1425
    %1427 = vmatpush1.msra.mxu0 %v1426
    %1428 = vmatprep.subr.mxu0 0.0
    %v1429 = vand.u32 %v1200, 4294901760
    %v1430 = vsub.f32 %v1200, %v1429
    %1431 = vmatpush1.msra.mxu0 %v1430
    %1432 = vmatprep.subr.mxu0 0.0
    %v1433 = vand.u32 %v1201, 4294901760
    %v1434 = vsub.f32 %v1201, %v1433
    %1435 = vmatpush1.msra.mxu0 %v1434
    %1436 = vmatprep.subr.mxu0 0.0
    %v1437 = vand.u32 %v1202, 4294901760
    %v1438 = vsub.f32 %v1202, %v1437
    %1439 = vmatpush1.msra.mxu0 %v1438
    %1440 = vmatprep.subr.mxu0 0.0
    %v1441 = vand.u32 %v1203, 4294901760
    %v1442 = vsub.f32 %v1203, %v1441
    %1443 = vmatpush1.msra.mxu0 %v1442
    %1444 = vmatprep.subr.mxu0 0.0
    %v1445 = vand.u32 %v1204, 4294901760
    %v1446 = vsub.f32 %v1204, %v1445
    %1447 = vmatpush1.msra.mxu0 %v1446
    %1448 = vmatprep.subr.mxu0 0.0
    %v1449 = vand.u32 %v1205, 4294901760
    %v1450 = vsub.f32 %v1205, %v1449
    %1451 = vmatpush1.msra.mxu0 %v1450
    %1452 = vmatprep.subr.mxu0 0.0
    %v1453 = vand.u32 %v1206, 4294901760
    %v1454 = vsub.f32 %v1206, %v1453
    %1455 = vmatpush1.msra.mxu0 %v1454
    %1456 = vmatprep.subr.mxu0 0.0
    %1457 = vmatpush1.msra.mxu0 0.0
    %1458 = vmatprep.subr.mxu0 0.0
    %1459 = vmatpush1.msra.mxu0 0.0
    %1460 = vmatprep.subr.mxu0 0.0
    %1461 = vmatpush1.msra.mxu0 0.0
    %1462 = vmatprep.subr.mxu0 0.0
    %1463 = vmatpush1.msra.mxu0 0.0
    %1464 = vmatprep.subr.mxu0 0.0
    %1465 = vmatpush1.msra.mxu0 0.0
    %1466 = vmatprep.subr.mxu0 0.0
    %1467 = vmatpush1.msra.mxu0 0.0
    %1468 = vmatprep.subr.mxu0 0.0
    %1469 = vmatpush1.msra.mxu0 0.0
    %1470 = vmatprep.subr.mxu0 0.0
    %1471 = vmatpush1.msra.mxu0 0.0
    %1472 = vmatprep.subr.mxu0 0.0
    %1473 = vmatpush1.msra.mxu0 0.0
    %1474 = vmatprep.subr.mxu0 0.0
    %1475 = vmatpush1.msra.mxu0 0.0
    %1476 = vmatprep.subr.mxu0 0.0
    %1477 = vmatpush1.msra.mxu0 0.0
    %1478 = vmatprep.subr.mxu0 0.0
    %1479 = vmatpush1.msra.mxu0 0.0
    %1480 = vmatprep.subr.mxu0 0.0
    %1481 = vmatpush1.msra.mxu0 0.0
    %1482 = vmatprep.subr.mxu0 0.0
    %1483 = vmatpush1.msra.mxu0 0.0
    %1484 = vmatprep.subr.mxu0 0.0
    %1485 = vmatpush1.msra.mxu0 0.0
    %1486 = vmatprep.subr.mxu0 0.0
    %1487 = vmatpush1.msra.mxu0 0.0
    %1488 = vmatprep.subr.mxu0 0.0
    %1489 = vmatpush1.msra.mxu0 0.0
    %1490 = vmatprep.subr.mxu0 0.0
    %1491 = vmatpush1.msra.mxu0 0.0
    %1492 = vmatprep.subr.mxu0 0.0
    %1493 = vmatpush1.msra.mxu0 0.0
    %1494 = vmatprep.subr.mxu0 0.0
    %1495 = vmatpush1.msra.mxu0 0.0
    %1496 = vmatprep.subr.mxu0 0.0
    %1497 = vmatpush1.msra.mxu0 0.0
    %1498 = vmatprep.subr.mxu0 0.0
    %1499 = vmatpush1.msra.mxu0 0.0
    %1500 = vmatprep.subr.mxu0 0.0
    %1501 = vmatpush1.msra.mxu0 0.0
    %1502 = vmatprep.subr.mxu0 0.0
    %1503 = vmatpush1.msra.mxu0 0.0
    %1504 = vmatprep.mubr.f32.mxu0 0.0
    %v1505 = vand.u32 %v1209, 4294901760
    %v1506 = vsub.f32 %v1209, %v1505
    %1507 = vmatmul.mubr.f32.gmra.mrb[0].mxu0 %v1506
    %v1508 = vpop.f32.mrb[0].mxu0
    %v1509 = vadd.f32 %v1415, %v1508
    %v1510 = vpop.f32.mrb[0].mxu0
    %1511 = vmatprep.mubr.f32.mxu0 0.0
    %v1512 = vand.u32 %v1212, 4294901760
    %v1513 = vsub.f32 %v1212, %v1512
    %1514 = vmatmul.mubr.f32.gmra.mrb[0].mxu0 %v1513
    %v1515 = vpop.f32.mrb[0].mxu0
    %v1516 = vadd.f32 %v1421, %v1515
    %v1517 = vpop.f32.mrb[0].mxu0
    %1518 = vdwg.mxu0
    %1519 = vmatprep.subr.mxu0 0.0
    %v1520 = vand.u32 %v1199, 4294901760
    %1521 = vmatpush1.msra.mxu0 %v1520
    %1522 = vmatprep.subr.mxu0 0.0
    %v1523 = vand.u32 %v1200, 4294901760
    %1524 = vmatpush1.msra.mxu0 %v1523
    %1525 = vmatprep.subr.mxu0 0.0
    %v1526 = vand.u32 %v1201, 4294901760
    %1527 = vmatpush1.msra.mxu0 %v1526
    %1528 = vmatprep.subr.mxu0 0.0
    %v1529 = vand.u32 %v1202, 4294901760
    %1530 = vmatpush1.msra.mxu0 %v1529
    %1531 = vmatprep.subr.mxu0 0.0
    %v1532 = vand.u32 %v1203, 4294901760
    %1533 = vmatpush1.msra.mxu0 %v1532
    %1534 = vmatprep.subr.mxu0 0.0
    %v1535 = vand.u32 %v1204, 4294901760
    %1536 = vmatpush1.msra.mxu0 %v1535
    %1537 = vmatprep.subr.mxu0 0.0
    %v1538 = vand.u32 %v1205, 4294901760
    %1539 = vmatpush1.msra.mxu0 %v1538
    %1540 = vmatprep.subr.mxu0 0.0
    %v1541 = vand.u32 %v1206, 4294901760
    %1542 = vmatpush1.msra.mxu0 %v1541
    %1543 = vmatprep.subr.mxu0 0.0
    %1544 = vmatpush1.msra.mxu0 0.0
    %1545 = vmatprep.subr.mxu0 0.0
    %1546 = vmatpush1.msra.mxu0 0.0
    %1547 = vmatprep.subr.mxu0 0.0
    %1548 = vmatpush1.msra.mxu0 0.0
    %1549 = vmatprep.subr.mxu0 0.0
    %1550 = vmatpush1.msra.mxu0 0.0
    %1551 = vmatprep.subr.mxu0 0.0
    %1552 = vmatpush1.msra.mxu0 0.0
    %1553 = vmatprep.subr.mxu0 0.0
    %1554 = vmatpush1.msra.mxu0 0.0
    %1555 = vmatprep.subr.mxu0 0.0
    %1556 = vmatpush1.msra.mxu0 0.0
    %1557 = vmatprep.subr.mxu0 0.0
    %1558 = vmatpush1.msra.mxu0 0.0
    %1559 = vmatprep.subr.mxu0 0.0
    %1560 = vmatpush1.msra.mxu0 0.0
    %1561 = vmatprep.subr.mxu0 0.0
    %1562 = vmatpush1.msra.mxu0 0.0
    %1563 = vmatprep.subr.mxu0 0.0
    %1564 = vmatpush1.msra.mxu0 0.0
    %1565 = vmatprep.subr.mxu0 0.0
    %1566 = vmatpush1.msra.mxu0 0.0
    %1567 = vmatprep.subr.mxu0 0.0
    %1568 = vmatpush1.msra.mxu0 0.0
    %1569 = vmatprep.subr.mxu0 0.0
    %1570 = vmatpush1.msra.mxu0 0.0
    %1571 = vmatprep.subr.mxu0 0.0
    %1572 = vmatpush1.msra.mxu0 0.0
    %1573 = vmatprep.subr.mxu0 0.0
    %1574 = vmatpush1.msra.mxu0 0.0
    %1575 = vmatprep.subr.mxu0 0.0
    %1576 = vmatpush1.msra.mxu0 0.0
    %1577 = vmatprep.subr.mxu0 0.0
    %1578 = vmatpush1.msra.mxu0 0.0
    %1579 = vmatprep.subr.mxu0 0.0
    %1580 = vmatpush1.msra.mxu0 0.0
    %1581 = vmatprep.subr.mxu0 0.0
    %1582 = vmatpush1.msra.mxu0 0.0
    %1583 = vmatprep.subr.mxu0 0.0
    %1584 = vmatpush1.msra.mxu0 0.0
    %1585 = vmatprep.subr.mxu0 0.0
    %1586 = vmatpush1.msra.mxu0 0.0
    %1587 = vmatprep.subr.mxu0 0.0
    %1588 = vmatpush1.msra.mxu0 0.0
    %1589 = vmatprep.subr.mxu0 0.0
    %1590 = vmatpush1.msra.mxu0 0.0
    %1591 = vmatprep.mubr.f32.mxu0 0.0
    %v1592 = vand.u32 %v1209, 4294901760
    %v1593 = vsub.f32 %v1209, %v1592
    %v1594 = vand.u32 %v1593, 4294901760
    %1595 = vmatmul.mubr.f32.gmra.mrb[0].mxu0 %v1594
    %v1596 = vpop.f32.mrb[0].mxu0
    %v1597 = vadd.f32 %v1509, %v1596
    %v1598 = vpop.f32.mrb[0].mxu0
    %1599 = vmatprep.mubr.f32.mxu0 0.0
    %v1600 = vand.u32 %v1212, 4294901760
    %v1601 = vsub.f32 %v1212, %v1600
    %v1602 = vand.u32 %v1601, 4294901760
    %1603 = vmatmul.mubr.f32.gmra.mrb[0].mxu0 %v1602
    %v1604 = vpop.f32.mrb[0].mxu0
    %v1605 = vadd.f32 %v1516, %v1604
    %v1606 = vpop.f32.mrb[0].mxu0
    %1607 = vdwg.mxu0
    %1608 = vmatprep.subr.mxu0 0.0
    %v1609 = vand.u32 %v1199, 4294901760
    %v1610 = vsub.f32 %v1199, %v1609
    %v1611 = vand.u32 %v1610, 4294901760
    %1612 = vmatpush1.msra.mxu0 %v1611
    %1613 = vmatprep.subr.mxu0 0.0
    %v1614 = vand.u32 %v1200, 4294901760
    %v1615 = vsub.f32 %v1200, %v1614
    %v1616 = vand.u32 %v1615, 4294901760
    %1617 = vmatpush1.msra.mxu0 %v1616
    %1618 = vmatprep.subr.mxu0 0.0
    %v1619 = vand.u32 %v1201, 4294901760
    %v1620 = vsub.f32 %v1201, %v1619
    %v1621 = vand.u32 %v1620, 4294901760
    %1622 = vmatpush1.msra.mxu0 %v1621
    %1623 = vmatprep.subr.mxu0 0.0
    %v1624 = vand.u32 %v1202, 4294901760
    %v1625 = vsub.f32 %v1202, %v1624
    %v1626 = vand.u32 %v1625, 4294901760
    %1627 = vmatpush1.msra.mxu0 %v1626
    %1628 = vmatprep.subr.mxu0 0.0
    %v1629 = vand.u32 %v1203, 4294901760
    %v1630 = vsub.f32 %v1203, %v1629
    %v1631 = vand.u32 %v1630, 4294901760
    %1632 = vmatpush1.msra.mxu0 %v1631
    %1633 = vmatprep.subr.mxu0 0.0
    %v1634 = vand.u32 %v1204, 4294901760
    %v1635 = vsub.f32 %v1204, %v1634
    %v1636 = vand.u32 %v1635, 4294901760
    %1637 = vmatpush1.msra.mxu0 %v1636
    %1638 = vmatprep.subr.mxu0 0.0
    %v1639 = vand.u32 %v1205, 4294901760
    %v1640 = vsub.f32 %v1205, %v1639
    %v1641 = vand.u32 %v1640, 4294901760
    %1642 = vmatpush1.msra.mxu0 %v1641
    %1643 = vmatprep.subr.mxu0 0.0
    %v1644 = vand.u32 %v1206, 4294901760
    %v1645 = vsub.f32 %v1206, %v1644
    %v1646 = vand.u32 %v1645, 4294901760
    %1647 = vmatpush1.msra.mxu0 %v1646
    %1648 = vmatprep.subr.mxu0 0.0
    %1649 = vmatpush1.msra.mxu0 0.0
    %1650 = vmatprep.subr.mxu0 0.0
    %1651 = vmatpush1.msra.mxu0 0.0
    %1652 = vmatprep.subr.mxu0 0.0
    %1653 = vmatpush1.msra.mxu0 0.0
    %1654 = vmatprep.subr.mxu0 0.0
    %1655 = vmatpush1.msra.mxu0 0.0
    %1656 = vmatprep.subr.mxu0 0.0
    %1657 = vmatpush1.msra.mxu0 0.0
    %1658 = vmatprep.subr.mxu0 0.0
    %1659 = vmatpush1.msra.mxu0 0.0
    %1660 = vmatprep.subr.mxu0 0.0
    %1661 = vmatpush1.msra.mxu0 0.0
    %1662 = vmatprep.subr.mxu0 0.0
    %1663 = vmatpush1.msra.mxu0 0.0
    %1664 = vmatprep.subr.mxu0 0.0
    %1665 = vmatpush1.msra.mxu0 0.0
    %1666 = vmatprep.subr.mxu0 0.0
    %1667 = vmatpush1.msra.mxu0 0.0
    %1668 = vmatprep.subr.mxu0 0.0
    %1669 = vmatpush1.msra.mxu0 0.0
    %1670 = vmatprep.subr.mxu0 0.0
    %1671 = vmatpush1.msra.mxu0 0.0
    %1672 = vmatprep.subr.mxu0 0.0
    %1673 = vmatpush1.msra.mxu0 0.0
    %1674 = vmatprep.subr.mxu0 0.0
    %1675 = vmatpush1.msra.mxu0 0.0
    %1676 = vmatprep.subr.mxu0 0.0
    %1677 = vmatpush1.msra.mxu0 0.0
    %1678 = vmatprep.subr.mxu0 0.0
    %1679 = vmatpush1.msra.mxu0 0.0
    %1680 = vmatprep.subr.mxu0 0.0
    %1681 = vmatpush1.msra.mxu0 0.0
    %1682 = vmatprep.subr.mxu0 0.0
    %1683 = vmatpush1.msra.mxu0 0.0
    %1684 = vmatprep.subr.mxu0 0.0
    %1685 = vmatpush1.msra.mxu0 0.0
    %1686 = vmatprep.subr.mxu0 0.0
    %1687 = vmatpush1.msra.mxu0 0.0
    %1688 = vmatprep.subr.mxu0 0.0
    %1689 = vmatpush1.msra.mxu0 0.0
    %1690 = vmatprep.subr.mxu0 0.0
    %1691 = vmatpush1.msra.mxu0 0.0
    %1692 = vmatprep.subr.mxu0 0.0
    %1693 = vmatpush1.msra.mxu0 0.0
    %1694 = vmatprep.subr.mxu0 0.0
    %1695 = vmatpush1.msra.mxu0 0.0
    %1696 = vmatprep.mubr.f32.mxu0 0.0
    %v1697 = vand.u32 %v1209, 4294901760
    %1698 = vmatmul.mubr.f32.gmra.mrb[0].mxu0 %v1697
    %v1699 = vpop.f32.mrb[0].mxu0
    %v1700 = vadd.f32 %v1597, %v1699
    %v1701 = vpop.f32.mrb[0].mxu0
    %1702 = vmatprep.mubr.f32.mxu0 0.0
    %v1703 = vand.u32 %v1212, 4294901760
    %1704 = vmatmul.mubr.f32.gmra.mrb[0].mxu0 %v1703
    %v1705 = vpop.f32.mrb[0].mxu0
    %v1706 = vadd.f32 %v1605, %v1705
    %v1707 = vpop.f32.mrb[0].mxu0
    %1708 = vdwg.mxu0
    %1709 = vmatprep.subr.mxu0 0.0
    %v1710 = vand.u32 %v1199, 4294901760
    %1711 = vmatpush1.msra.mxu0 %v1710
    %1712 = vmatprep.subr.mxu0 0.0
    %v1713 = vand.u32 %v1200, 4294901760
    %1714 = vmatpush1.msra.mxu0 %v1713
    %1715 = vmatprep.subr.mxu0 0.0
    %v1716 = vand.u32 %v1201, 4294901760
    %1717 = vmatpush1.msra.mxu0 %v1716
    %1718 = vmatprep.subr.mxu0 0.0
    %v1719 = vand.u32 %v1202, 4294901760
    %1720 = vmatpush1.msra.mxu0 %v1719
    %1721 = vmatprep.subr.mxu0 0.0
    %v1722 = vand.u32 %v1203, 4294901760
    %1723 = vmatpush1.msra.mxu0 %v1722
    %1724 = vmatprep.subr.mxu0 0.0
    %v1725 = vand.u32 %v1204, 4294901760
    %1726 = vmatpush1.msra.mxu0 %v1725
    %1727 = vmatprep.subr.mxu0 0.0
    %v1728 = vand.u32 %v1205, 4294901760
    %1729 = vmatpush1.msra.mxu0 %v1728
    %1730 = vmatprep.subr.mxu0 0.0
    %v1731 = vand.u32 %v1206, 4294901760
    %1732 = vmatpush1.msra.mxu0 %v1731
    %1733 = vmatprep.subr.mxu0 0.0
    %1734 = vmatpush1.msra.mxu0 0.0
    %1735 = vmatprep.subr.mxu0 0.0
    %1736 = vmatpush1.msra.mxu0 0.0
    %1737 = vmatprep.subr.mxu0 0.0
    %1738 = vmatpush1.msra.mxu0 0.0
    %1739 = vmatprep.subr.mxu0 0.0
    %1740 = vmatpush1.msra.mxu0 0.0
    %1741 = vmatprep.subr.mxu0 0.0
    %1742 = vmatpush1.msra.mxu0 0.0
    %1743 = vmatprep.subr.mxu0 0.0
    %1744 = vmatpush1.msra.mxu0 0.0
    %1745 = vmatprep.subr.mxu0 0.0
    %1746 = vmatpush1.msra.mxu0 0.0
    %1747 = vmatprep.subr.mxu0 0.0
    %1748 = vmatpush1.msra.mxu0 0.0
    %1749 = vmatprep.subr.mxu0 0.0
    %1750 = vmatpush1.msra.mxu0 0.0
    %1751 = vmatprep.subr.mxu0 0.0
    %1752 = vmatpush1.msra.mxu0 0.0
    %1753 = vmatprep.subr.mxu0 0.0
    %1754 = vmatpush1.msra.mxu0 0.0
    %1755 = vmatprep.subr.mxu0 0.0
    %1756 = vmatpush1.msra.mxu0 0.0
    %1757 = vmatprep.subr.mxu0 0.0
    %1758 = vmatpush1.msra.mxu0 0.0
    %1759 = vmatprep.subr.mxu0 0.0
    %1760 = vmatpush1.msra.mxu0 0.0
    %1761 = vmatprep.subr.mxu0 0.0
    %1762 = vmatpush1.msra.mxu0 0.0
    %1763 = vmatprep.subr.mxu0 0.0
    %1764 = vmatpush1.msra.mxu0 0.0
    %1765 = vmatprep.subr.mxu0 0.0
    %1766 = vmatpush1.msra.mxu0 0.0
    %1767 = vmatprep.subr.mxu0 0.0
    %1768 = vmatpush1.msra.mxu0 0.0
    %1769 = vmatprep.subr.mxu0 0.0
    %1770 = vmatpush1.msra.mxu0 0.0
    %1771 = vmatprep.subr.mxu0 0.0
    %1772 = vmatpush1.msra.mxu0 0.0
    %1773 = vmatprep.subr.mxu0 0.0
    %1774 = vmatpush1.msra.mxu0 0.0
    %1775 = vmatprep.subr.mxu0 0.0
    %1776 = vmatpush1.msra.mxu0 0.0
    %1777 = vmatprep.subr.mxu0 0.0
    %1778 = vmatpush1.msra.mxu0 0.0
    %1779 = vmatprep.subr.mxu0 0.0
    %1780 = vmatpush1.msra.mxu0 0.0
    %1781 = vmatprep.mubr.f32.mxu0 0.0
    %v1782 = vand.u32 %v1209, 4294901760
    %1783 = vmatmul.mubr.f32.gmra.mrb[0].mxu0 %v1782
    %v1784 = vpop.f32.mrb[0].mxu0
    %v1785 = vadd.f32 %v1700, %v1784
    %v1786 = vpop.f32.mrb[0].mxu0
    %1787 = vmatprep.mubr.f32.mxu0 0.0
    %v1788 = vand.u32 %v1212, 4294901760
    %1789 = vmatmul.mubr.f32.gmra.mrb[0].mxu0 %v1788
    %v1790 = vpop.f32.mrb[0].mxu0
    %v1791 = vadd.f32 %v1706, %v1790
    %v1792 = vpop.f32.mrb[0].mxu0
    %1793 = vdwg.mxu0
    %v1794 = vadd.f32 %v1197, %v1785
    %v1795 = vadd.f32 %v1198, %v1791
    %1796 = vst.msk [vmem:[#allocation2] sm:$0xff] %vm652, %v1794
    %1797 = vst.msk [vmem:[#allocation2 + $0x8] sm:$0xff] %vm652, %v1795
    // Predicated region
    $region42: #{tpu_custom_call.1} parent=1 // pred_check
      %p1798 = pneg %p40
    $region43: #{tpu_custom_call.1} parent=1 // pred_check_branch
      %1800 = sbr.rel (%p1798) target = $region45
    $region44: #{tpu_custom_call.1} parent=1 // pred_region
      %v1801 = vld [vmem:[#allocation3] sm:$0xff]
      %v1802 = vld [vmem:[#allocation3 + $0x8] sm:$0xff]
      %v1803 = vld [vmem:[#allocation2] sm:$0xff]
      %v1804 = vld [vmem:[#allocation2 + $0x8] sm:$0xff]
      %v1805 = vld [vmem:[%s8] sm:$0x1]
      %v1807 = vlaneseq
      %v1808 = vshrl.u32 %v1807, 7
      %v1809 = vsub.s32 0, %v1808
      %v1810 = vrot.slane %v1805, %v1809
      %v1812 = vadd.f32 %v1803, %v1810
      %v1813 = vadd.f32 %v1804, %v1810
      %1815 = vset.pattern.permute.xlu0 0
      %1816 = vperm.xlu0 %1815, %v1801
      %v1817 = vpop.permute.xlu0 %1816
      %1820 = vset.pattern.permute.xlu0 0
      %1821 = vperm.xlu0 %1820, %v1802
      %v1822 = vpop.permute.xlu0 %1821
      %v1824 = vmul.f32 %v38, %v1817
      %v1825 = vmul.f32 %v39, %v1822
      %v1826 = vsub.f32 1.0, %v1801
      %v1827 = vsub.f32 1.0, %v1802
      %1829 = vset.pattern.permute.xlu0 0
      %1830 = vperm.xlu0 %1829, %v1826
      %v1831 = vpop.permute.xlu0 %1830
      %1834 = vset.pattern.permute.xlu0 0
      %1835 = vperm.xlu0 %1834, %v1827
      %v1836 = vpop.permute.xlu0 %1835
      %v1838 = vmul.f32 %v1812, %v1831
      %v1839 = vmul.f32 %v1813, %v1836
      %v1840 = vadd.f32 %v1824, %v1838
      %v1841 = vadd.f32 %v1825, %v1839
      %1842 = vst.msk [vmem:[#allocation5] sm:$0xff] %vm652, %v1840
      %1843 = vst.msk [vmem:[#allocation5 + $0x8] sm:$0xff] %vm652, %v1841
      %1844 = vst [vmem:[#allocation7] sm:$0xff] %v1817
      %1845 = vst [vmem:[#allocation7 + $0x8] sm:$0xff] %v1822
    $region45: #{tpu_custom_call.1} parent=1 // pred_fallthru
      _
    // Predicated region
    $region46: #{tpu_custom_call.1} parent=1 // pred_check
      _
    $region47: #{tpu_custom_call.1} parent=1 // pred_check_branch
      %1847 = sbr.rel (0) target = $region49
    $region48: #{tpu_custom_call.1} parent=1 // pred_region
      %s1849 = ssub.s32 256, 256
      %1850 = vsyncadd [#allocation6], %s1849
      %s1851 = sshll.u32 [#allocation5], 4
      %s1852 = int_to_ptr.vmem [resolvable:$true] %s1851
      %1857 = dma.vmem_to_hbm [thread:$0]  %s1852, 256, %s9, [#allocation6], 128, 128, 8
    $region49: #{tpu_custom_call.1} parent=1 // pred_fallthru
      _
    // Predicated region
    $region50: #{tpu_custom_call.1} parent=1 // pred_check
      _
    $region51: #{tpu_custom_call.1} parent=1 // pred_check_branch
      %1859 = sbr.rel (0) target = $region53
    $region52: #{tpu_custom_call.1} parent=1 // pred_region
      %s1861 = ssub.s32 256, 256
      %1862 = vsyncadd [#allocation8], %s1861
      %s1863 = sshll.u32 [#allocation7], 4
      %s1864 = int_to_ptr.vmem [resolvable:$true] %s1863
      %1869 = dma.vmem_to_hbm [thread:$0]  %s1864, 256, %s10, [#allocation8], 128, 128, 8
    $region53: #{tpu_custom_call.1} parent=1 // pred_fallthru
      _
    // Predicated region
    $region54: #{tpu_custom_call.1} parent=1 // pred_check
      _
    $region55: #{tpu_custom_call.1} parent=1 // pred_check_branch
      %1871 = sbr.rel (0) target = $region57
    $region56: #{tpu_custom_call.1} parent=1 // pred_region
      %1872 = dma.done [#allocation6], 256
    $region57: #{tpu_custom_call.1} parent=1 // pred_fallthru
      _
    // Predicated region
    $region58: #{tpu_custom_call.1} parent=1 // pred_check
      _
    $region59: #{tpu_custom_call.1} parent=1 // pred_check_branch
      %1874 = sbr.rel (0) target = $region61
    $region60: #{tpu_custom_call.1} parent=1 // pred_region
      %1875 = dma.done [#allocation8], 256
    $region61: #{tpu_custom_call.1} parent=1 // pred_fallthru
      _
    %1876 = vsyncpa [#allocation6], 1
    %1877 = vsyncpa [#allocation8], 1

</llo_original>
